<compile_context>
chip_gen: v5e
topology: v5e:2x2
jax: 0.10.0
libtpu: 0.0.40
codegen_flags: <defaults>
</compile_context>

<pallas_src>
import functools

import jax
import jax.numpy as jnp
from jax.experimental import pallas as pl
from jax.experimental.pallas import tpu as pltpu


def _layernorm(x, w, b, eps):
    # PyTorch nn.LayerNorm over last dim (biased variance), computed in f32.
    mu = jnp.mean(x, axis=-1, keepdims=True)
    xc = x - mu
    var = jnp.mean(xc * xc, axis=-1, keepdims=True)
    inv = jax.lax.rsqrt(var + eps)
    return xc * inv * w + b


def decoder_stack_kernel(x_ref, mask_ref,
                         ipw_ref, opw_ref, w1_ref, w2_ref, vec_ref,
                         o_ref,
                         act_ref,
                         *, nhead, eps):
    l = pl.program_id(1)
    n_layers = pl.num_programs(1)

    # Load the input activations into the resident f32 carry at the first layer.
    @pl.when(l == 0)
    def _():
        act_ref[...] = x_ref[...].astype(jnp.float32)

    x = act_ref[...]                               # (TB, S, E) f32, carried in VMEM
    TB, S, E = x.shape
    hd = E // nhead
    G = TB * nhead

    # Fused per-layer vectors: one (8, 3E) f32 tile, sliced statically.
    ipb = vec_ref[0:1, :]                          # (1, 3E)  (q part pre-scaled)
    opb = vec_ref[1:2, 0:E]                        # (1, E)
    ln1w = vec_ref[2:3, 0:E]
    ln1b = vec_ref[3:4, 0:E]
    ln2w = vec_ref[4:5, 0:E]
    ln2b = vec_ref[5:6, 0:E]

    # ---- Multi-head self-attention (nn.MultiheadAttention, batch_first) ----
    x2 = x.reshape(TB * S, E)
    qkv = jnp.dot(x2.astype(jnp.bfloat16), ipw_ref[...],
                  preferred_element_type=jnp.float32) + ipb       # (TB*S, 3E) f32

    # 1/sqrt(hd) already folded into the q rows of in_proj weight & bias at pack time.
    def heads(t):                                  # (TB*S, E) -> (TB*nhead, S, hd)
        return (jnp.transpose(t.reshape(TB, S, nhead, hd), (0, 2, 1, 3))
                .reshape(G, S, hd).astype(jnp.bfloat16))

    q3 = heads(qkv[:, 0 * E:1 * E])
    k3 = heads(qkv[:, 1 * E:2 * E])
    v3 = heads(qkv[:, 2 * E:3 * E])

    s = jnp.einsum('gqd,gkd->gqk', q3, k3,
                   preferred_element_type=jnp.float32)            # (G, S, S) f32
    # Broadcast the per-batch key mask over heads & query rows without materializing
    # a (G, S, S) mask: view scores as (TB, nhead*S, S) and add (TB, 1, S).
    s = s.reshape(TB, nhead * S, S) + mask_ref[...]
    s = s - jnp.max(s, axis=-1, keepdims=True)
    p = jnp.exp(s)                                                # f32 (safe on v5e too)
    p = p * pl.reciprocal(jnp.sum(p, axis=-1, keepdims=True), approx=True)
    p = p.reshape(G, S, S).astype(jnp.bfloat16)

    ctx = jnp.einsum('gqk,gkd->gqd', p, v3,
                     preferred_element_type=jnp.float32)          # (G, S, hd) f32
    attn = jnp.transpose(ctx.reshape(TB, nhead, S, hd),
                         (0, 2, 1, 3)).reshape(TB * S, E)
    attn = jnp.dot(attn.astype(jnp.bfloat16), opw_ref[...],
                   preferred_element_type=jnp.float32) + opb      # (TB*S, E) f32

    # ---- AddNorm 1 ----
    y = _layernorm(x2 + attn, ln1w, ln1b, eps)                    # (TB*S, E) f32

    # ---- PositionWiseFFN (relu, no bias) ----
    h1 = jnp.maximum(
        jnp.dot(y.astype(jnp.bfloat16), w1_ref[...],
                preferred_element_type=jnp.float32), 0.0).astype(jnp.bfloat16)
    ffn = jnp.dot(h1, w2_ref[...], preferred_element_type=jnp.float32)

    # ---- AddNorm 2 ----
    out = _layernorm(y + ffn, ln2w, ln2b, eps).reshape(TB, S, E)
    act_ref[...] = out                                            # carry to next layer

    @pl.when(l == n_layers - 1)
    def _():
        o_ref[...] = out.astype(o_ref.dtype)


def decoder_layer_forward(inputs, key_padding_mask, packed, *, nhead, eps=1e-5,
                          batch_block=None):
    """DecoderLayer.forward: full stack of DecoderBlocks in one pallas_call (eval)."""
    B, S, E = inputs.shape
    L = packed["ipw"].shape[0]
    F = packed["w1"].shape[-1]

    if batch_block is None:
        # Largest divisor of B not exceeding 8 (amortizes per-layer weight streaming).
        batch_block = max(t for t in range(1, min(B, 8) + 1) if B % t == 0)
    TB = batch_block
    assert B % TB == 0, "batch_block must divide batch size"
    NB = B // TB

    # bool mask (True = ignore key) -> additive float mask (B, 1, S)
    mask_add = jnp.where(key_padding_mask, -1e9, 0.0).astype(jnp.float32).reshape(B, 1, S)

    def per_batch(shape):
        return pl.BlockSpec((TB,) + shape, lambda b, l: (b, 0, 0))

    def per_layer(shape):
        return pl.BlockSpec((None,) + shape, lambda b, l: (l, 0, 0))

    kern = functools.partial(decoder_stack_kernel, nhead=nhead, eps=eps)

    return pl.pallas_call(
        kern,
        out_shape=jax.ShapeDtypeStruct((B, S, E), inputs.dtype),
        grid=(NB, L),
        in_specs=[
            per_batch((S, E)),           # x
            per_batch((1, S)),           # additive key-padding mask
            per_layer((E, 3 * E)),       # in_proj weight (pre-transposed, q-scaled, bf16)
            per_layer((E, E)),           # out_proj weight
            per_layer((E, F)),           # ffn dense1 weight
            per_layer((F, E)),           # ffn dense2 weight
            per_layer((8, 3 * E)),       # fused per-layer vectors (f32)
        ],
        out_specs=per_batch((S, E)),
        scratch_shapes=[pltpu.VMEM((TB, S, E), jnp.float32)],   # activation carry
        compiler_params=pltpu.CompilerParams(
            dimension_semantics=("parallel", "arbitrary"),
            vmem_limit_bytes=64 * 1024 * 1024),   # within physical on v5e/v6e/v7x
    )(inputs, mask_add,
      packed["ipw"], packed["opw"], packed["w1"], packed["w2"], packed["vecs"])


# ---------------------------------------------------------------------------
# Parameter construction / packing (host-side, done once at init)
# ---------------------------------------------------------------------------

def init_block_params(key, hidden_size, dim_feedforward):
    E, F = hidden_size, dim_feedforward
    ks = jax.random.split(key, 6)
    s_e = 1.0 / (E ** 0.5)
    s_f = 1.0 / (F ** 0.5)
    return {
        "in_proj_w": jax.random.normal(ks[0], (3 * E, E), jnp.float32) * s_e,
        "in_proj_b": jax.random.normal(ks[1], (3 * E,), jnp.float32) * 0.02,
        "out_proj_w": jax.random.normal(ks[2], (E, E), jnp.float32) * s_e,
        "out_proj_b": jax.random.normal(ks[3], (E,), jnp.float32) * 0.02,
        "ln1_w": jnp.ones((E,), jnp.float32),
        "ln1_b": jnp.zeros((E,), jnp.float32),
        "w1": jax.random.normal(ks[4], (F, E), jnp.float32) * s_e,   # dense1 (no bias)
        "w2": jax.random.normal(ks[5], (E, F), jnp.float32) * s_f,   # dense2 (no bias)
        "ln2_w": jnp.ones((E,), jnp.float32),
        "ln2_b": jnp.zeros((E,), jnp.float32),
    }


def pack_layer_params(layer_params, *, nhead):
    """Stack per-layer params with a leading layer axis.

    Weights are pre-transposed to (in, out) layout, cast to bf16 ONCE, and the
    1/sqrt(head_dim) attention scale is folded into the q rows of the in_proj
    weight AND bias.  The six small per-layer vectors are fused into one
    (L, 8, 3E) f32 array (one DMA per grid step instead of six)."""
    E = layer_params[0]["in_proj_w"].shape[1]
    hd = E // nhead
    scale = 1.0 / float(hd) ** 0.5

    def stk(fn):
        return jnp.stack([fn(p) for p in layer_params])

    def ipw(p):
        w = p["in_proj_w"].T                       # (E, 3E)
        w = w.at[:, :E].multiply(scale)            # fold 1/sqrt(hd) into q columns
        return w.astype(jnp.bfloat16)

    def vecs(p):
        v = jnp.zeros((8, 3 * E), jnp.float32)
        ipb = p["in_proj_b"].at[:E].multiply(scale)   # scale q bias too
        v = v.at[0, :].set(ipb)
        v = v.at[1, :E].set(p["out_proj_b"])
        v = v.at[2, :E].set(p["ln1_w"])
        v = v.at[3, :E].set(p["ln1_b"])
        v = v.at[4, :E].set(p["ln2_w"])
        v = v.at[5, :E].set(p["ln2_b"])
        return v

    return {
        "ipw": stk(ipw),                                               # (L, E, 3E) bf16
        "opw": stk(lambda p: p["out_proj_w"].T.astype(jnp.bfloat16)),  # (L, E, E)  bf16
        "w1": stk(lambda p: p["w1"].T.astype(jnp.bfloat16)),           # (L, E, F)  bf16
        "w2": stk(lambda p: p["w2"].T.astype(jnp.bfloat16)),           # (L, F, E)  bf16
        "vecs": stk(vecs),                                             # (L, 8, 3E) f32
    }


# ---------------------------------------------------------------------------
# Pure-JAX reference (f32 everywhere) for a correctness sanity check
# ---------------------------------------------------------------------------

def reference_forward(x, key_padding_mask, layer_params, *, nhead, eps):
    B, S, E = x.shape
    hd = E // nhead
    mask = jnp.where(key_padding_mask, -1e9, 0.0)[:, None, None, :]   # (B,1,1,S)
    out = x
    for p in layer_params:
        qkv = out @ p["in_proj_w"].T + p["in_proj_b"]
        q, k, v = jnp.split(qkv, 3, axis=-1)
        sh = lambda t: t.reshape(B, S, nhead, hd).transpose(0, 2, 1, 3)
        s = jnp.einsum('bhqd,bhkd->bhqk', sh(q), sh(k)) / (hd ** 0.5) + mask
        a = jax.nn.softmax(s, axis=-1)
        ctx = jnp.einsum('bhqk,bhkd->bhqd', a, sh(v)).transpose(0, 2, 1, 3).reshape(B, S, E)
        attn = ctx @ p["out_proj_w"].T + p["out_proj_b"]
        y = _layernorm(out + attn, p["ln1_w"], p["ln1_b"], eps)
        ffn = jnp.maximum(y @ p["w1"].T, 0.0) @ p["w2"].T
        out = _layernorm(y + ffn, p["ln2_w"], p["ln2_b"], eps)
    return out


if __name__ == "__main__":
    # Small, forward-consistent shapes: batch=2, seq=8, hidden=32, nhead=4,
    # dim_feedforward=64, num_decoder_layers=2.
    B, S, E, NH, F, NLAYERS = 2, 8, 32, 4, 64, 2
    EPS = 1e-5   # PyTorch nn.LayerNorm default

    key = jax.random.PRNGKey(0)
    k_in, k_params = jax.random.split(key)

    inputs = jax.random.normal(k_in, (B, S, E), jnp.float32)

    # key_padding_mask: bool (B, S); True = that key position is ignored.
    key_padding_mask = jnp.zeros((B, S), dtype=bool)
    key_padding_mask = key_padding_mask.at[1, S - 2:].set(True)

    layer_keys = jax.random.split(k_params, NLAYERS)
    layer_params = [init_block_params(k, E, F) for k in layer_keys]
    packed = pack_layer_params(layer_params, nhead=NH)

    out = decoder_layer_forward(inputs, key_padding_mask, packed, nhead=NH, eps=EPS)
    out = jax.block_until_ready(out)

    assert out.shape == (B, S, E)
    assert bool(jnp.all(jnp.isfinite(out)))

    # Sanity-check against a pure-JAX f32 reference (loose tolerance: kernel matmuls
    # run in bf16 with f32 accumulation, softmax uses approximate reciprocal).
    ref = reference_forward(inputs, key_padding_mask, layer_params, nhead=NH, eps=EPS)
    max_diff = float(jnp.max(jnp.abs(out - ref)))
    assert max_diff < 0.2, f"max diff vs reference too large: {max_diff}"

    print("KERNEL_OK")
</pallas_src>

<mosaic_0001>
module attributes {stable_mosaic.version = 11 : i64} {
  func.func @decoder_stack_kernel(%arg0: i32, %arg1: i32, %arg2: memref<2x8x32xf32, #tpu.memory_space<vmem>>, %arg3: memref<2x1x8xf32, #tpu.memory_space<vmem>>, %arg4: memref<1x32x96xbf16, #tpu.memory_space<vmem>>, %arg5: memref<1x32x32xbf16, #tpu.memory_space<vmem>>, %arg6: memref<1x32x64xbf16, #tpu.memory_space<vmem>>, %arg7: memref<1x64x32xbf16, #tpu.memory_space<vmem>>, %arg8: memref<1x8x96xf32, #tpu.memory_space<vmem>>, %arg9: memref<2x8x32xf32, #tpu.memory_space<vmem>>, %arg10: memref<2x8x32xf32, #tpu.memory_space<vmem>>) attributes {dimension_semantics = [#tpu.dimension_semantics<parallel>, #tpu.dimension_semantics<arbitrary>], iteration_bounds = array<i64: 1, 2>, scalar_prefetch = 0 : i64, scratch_operands = 1 : i64, tpu.core_type = #tpu.core_type<tc>, window_params = [{transform_indices = @transform_0, window_bounds = array<i64: 2, 8, 32>}, {transform_indices = @transform_1, window_bounds = array<i64: 2, 1, 8>}, {transform_indices = @transform_2, window_bounds = array<i64: 1, 32, 96>}, {transform_indices = @transform_3, window_bounds = array<i64: 1, 32, 32>}, {transform_indices = @transform_4, window_bounds = array<i64: 1, 32, 64>}, {transform_indices = @transform_5, window_bounds = array<i64: 1, 64, 32>}, {transform_indices = @transform_6, window_bounds = array<i64: 1, 8, 96>}, {transform_indices = @transform_7, window_bounds = array<i64: 2, 8, 32>}]} {
    %c0_i32 = arith.constant 0 : i32
    %0 = arith.cmpi eq, %arg1, %c0_i32 : i32
    %1 = arith.extui %0 : i1 to i32
    %c0_i32_0 = arith.constant 0 : i32
    %2 = arith.cmpi ne, %1, %c0_i32_0 : i32
    scf.if %2 {
      %c0_53 = arith.constant 0 : index
      %c0_54 = arith.constant 0 : index
      %c0_55 = arith.constant 0 : index
      %122 = vector.load %arg2[%c0_53, %c0_54, %c0_55] : memref<2x8x32xf32, #tpu.memory_space<vmem>>, vector<2x8x32xf32>
      %c0_56 = arith.constant 0 : index
      %c0_57 = arith.constant 0 : index
      %c0_58 = arith.constant 0 : index
      %123 = vector.load %arg10[%c0_56, %c0_57, %c0_58] : memref<2x8x32xf32, #tpu.memory_space<vmem>>, vector<2x8x32xf32>
      tpu.vector_store %arg10[%c0_56, %c0_57, %c0_58], %122 {strides = array<i32>} : memref<2x8x32xf32, #tpu.memory_space<vmem>>, vector<2x8x32xf32>,
    } else {
    }
    %c0 = arith.constant 0 : index
    %c0_1 = arith.constant 0 : index
    %c0_2 = arith.constant 0 : index
    %3 = vector.load %arg10[%c0, %c0_1, %c0_2] : memref<2x8x32xf32, #tpu.memory_space<vmem>>, vector<2x8x32xf32>
    %c0_3 = arith.constant 0 : index
    %c0_4 = arith.constant 0 : index
    %c0_5 = arith.constant 0 : index
    %4 = vector.load %arg8[%c0_3, %c0_4, %c0_5] : memref<1x8x96xf32, #tpu.memory_space<vmem>>, vector<1x1x96xf32>
    %5 = vector.shape_cast %4 : vector<1x1x96xf32> to vector<1x96xf32>
    %c0_6 = arith.constant 0 : index
    %c1 = arith.constant 1 : index
    %c0_7 = arith.constant 0 : index
    %6 = vector.load %arg8[%c0_6, %c1, %c0_7] : memref<1x8x96xf32, #tpu.memory_space<vmem>>, vector<1x1x32xf32>
    %7 = vector.shape_cast %6 : vector<1x1x32xf32> to vector<1x32xf32>
    %c0_8 = arith.constant 0 : index
    %c2 = arith.constant 2 : index
    %c0_9 = arith.constant 0 : index
    %8 = vector.load %arg8[%c0_8, %c2, %c0_9] : memref<1x8x96xf32, #tpu.memory_space<vmem>>, vector<1x1x32xf32>
    %9 = vector.shape_cast %8 : vector<1x1x32xf32> to vector<1x32xf32>
    %c0_10 = arith.constant 0 : index
    %c3 = arith.constant 3 : index
    %c0_11 = arith.constant 0 : index
    %10 = vector.load %arg8[%c0_10, %c3, %c0_11] : memref<1x8x96xf32, #tpu.memory_space<vmem>>, vector<1x1x32xf32>
    %11 = vector.shape_cast %10 : vector<1x1x32xf32> to vector<1x32xf32>
    %c0_12 = arith.constant 0 : index
    %c4 = arith.constant 4 : index
    %c0_13 = arith.constant 0 : index
    %12 = vector.load %arg8[%c0_12, %c4, %c0_13] : memref<1x8x96xf32, #tpu.memory_space<vmem>>, vector<1x1x32xf32>
    %13 = vector.shape_cast %12 : vector<1x1x32xf32> to vector<1x32xf32>
    %c0_14 = arith.constant 0 : index
    %c5 = arith.constant 5 : index
    %c0_15 = arith.constant 0 : index
    %14 = vector.load %arg8[%c0_14, %c5, %c0_15] : memref<1x8x96xf32, #tpu.memory_space<vmem>>, vector<1x1x32xf32>
    %15 = vector.shape_cast %14 : vector<1x1x32xf32> to vector<1x32xf32>
    %16 = vector.shape_cast %3 : vector<2x8x32xf32> to vector<16x32xf32>
    %17 = arith.truncf %16 : vector<16x32xf32> to vector<16x32xbf16>
    %c0_16 = arith.constant 0 : index
    %c0_17 = arith.constant 0 : index
    %c0_18 = arith.constant 0 : index
    %18 = vector.load %arg4[%c0_16, %c0_17, %c0_18] : memref<1x32x96xbf16, #tpu.memory_space<vmem>>, vector<1x32x96xbf16>
    %19 = vector.shape_cast %18 : vector<1x32x96xbf16> to vector<32x96xbf16>
    %cst = arith.constant dense<0.000000e+00> : vector<16x96xf32>
    %20 = tpu.matmul %17, %19, %cst {dimension_numbers = #tpu.dot_dimension_numbers<[1], [0], [0], [1], [0, 0, 1, 1], [], []>} : vector<16x32xbf16>, vector<32x96xbf16>, vector<16x96xf32> -> vector<16x96xf32>
    %21 = vector.broadcast %5 : vector<1x96xf32> to vector<16x96xf32>
    %22 = arith.addf %20, %21 : vector<16x96xf32>
    %23 = vector.extract_strided_slice %22 {offsets = [0, 0], sizes = [16, 32], strides = [1, 1]} : vector<16x96xf32> to vector<16x32xf32>
    %24 = vector.shape_cast %23 : vector<16x32xf32> to vector<2x8x4x8xf32>
    %25 = tpu.transpose %24, [0, 2, 1, 3] : vector<2x8x4x8xf32> -> vector<2x4x8x8xf32>
    %26 = vector.shape_cast %25 : vector<2x4x8x8xf32> to vector<8x8x8xf32>
    %27 = arith.truncf %26 : vector<8x8x8xf32> to vector<8x8x8xbf16>
    %28 = vector.extract_strided_slice %22 {offsets = [0, 32], sizes = [16, 32], strides = [1, 1]} : vector<16x96xf32> to vector<16x32xf32>
    %29 = vector.shape_cast %28 : vector<16x32xf32> to vector<2x8x4x8xf32>
    %30 = tpu.transpose %29, [0, 2, 1, 3] : vector<2x8x4x8xf32> -> vector<2x4x8x8xf32>
    %31 = vector.shape_cast %30 : vector<2x4x8x8xf32> to vector<8x8x8xf32>
    %32 = arith.truncf %31 : vector<8x8x8xf32> to vector<8x8x8xbf16>
    %33 = vector.extract_strided_slice %22 {offsets = [0, 64], sizes = [16, 32], strides = [1, 1]} : vector<16x96xf32> to vector<16x32xf32>
    %34 = vector.shape_cast %33 : vector<16x32xf32> to vector<2x8x4x8xf32>
    %35 = tpu.transpose %34, [0, 2, 1, 3] : vector<2x8x4x8xf32> -> vector<2x4x8x8xf32>
    %36 = vector.shape_cast %35 : vector<2x4x8x8xf32> to vector<8x8x8xf32>
    %37 = arith.truncf %36 : vector<8x8x8xf32> to vector<8x8x8xbf16>
    "tpu.trace_start"() <{level = 10 : i32, message = "gqd,gkd->gqk"}> : () -> ()
    %cst_19 = arith.constant dense<0.000000e+00> : vector<8x8x8xf32>
    %38 = tpu.matmul %27, %32, %cst_19 {dimension_numbers = #tpu.dot_dimension_numbers<[2], [2], [1], [1], [0, 0, 0, 1, 1, 1], [0], [0]>} : vector<8x8x8xbf16>, vector<8x8x8xbf16>, vector<8x8x8xf32> -> vector<8x8x8xf32>
    "tpu.trace_stop"() : () -> ()
    %39 = vector.shape_cast %38 : vector<8x8x8xf32> to vector<2x32x8xf32>
    %c0_20 = arith.constant 0 : index
    %c0_21 = arith.constant 0 : index
    %c0_22 = arith.constant 0 : index
    %40 = vector.load %arg3[%c0_20, %c0_21, %c0_22] : memref<2x1x8xf32, #tpu.memory_space<vmem>>, vector<2x1x8xf32>
    %41 = vector.broadcast %40 : vector<2x1x8xf32> to vector<2x32x8xf32>
    %42 = arith.addf %39, %41 : vector<2x32x8xf32>
    %cst_23 = arith.constant dense<0xFF800000> : vector<2x32xf32>
    %43 = vector.multi_reduction <maximumf>, %42, %cst_23 [2] : vector<2x32x8xf32> to vector<2x32xf32>
    %44 = vector.shape_cast %43 : vector<2x32xf32> to vector<2x32x1xf32>
    %45 = vector.broadcast %44 : vector<2x32x1xf32> to vector<2x32x8xf32>
    %46 = arith.subf %42, %45 : vector<2x32x8xf32>
    %47 = math.exp %46 : vector<2x32x8xf32>
    %cst_24 = arith.constant dense<0.000000e+00> : vector<2x32xf32>
    %48 = vector.multi_reduction <add>, %47, %cst_24 [2] : vector<2x32x8xf32> to vector<2x32xf32>
    %49 = vector.shape_cast %48 : vector<2x32xf32> to vector<2x32x1xf32>
    %50 = tpu.reciprocal %49 {approx = true} : vector<2x32x1xf32> -> vector<2x32x1xf32>
    %51 = vector.broadcast %50 : vector<2x32x1xf32> to vector<2x32x8xf32>
    %52 = arith.mulf %47, %51 : vector<2x32x8xf32>
    %53 = vector.shape_cast %52 : vector<2x32x8xf32> to vector<8x8x8xf32>
    %54 = arith.truncf %53 : vector<8x8x8xf32> to vector<8x8x8xbf16>
    "tpu.trace_start"() <{level = 10 : i32, message = "gqk,gkd->gqd"}> : () -> ()
    %cst_25 = arith.constant dense<0.000000e+00> : vector<8x8x8xf32>
    %55 = tpu.matmul %54, %37, %cst_25 {dimension_numbers = #tpu.dot_dimension_numbers<[2], [1], [1], [2], [0, 0, 0, 1, 1, 2], [0], [0]>} : vector<8x8x8xbf16>, vector<8x8x8xbf16>, vector<8x8x8xf32> -> vector<8x8x8xf32>
    "tpu.trace_stop"() : () -> ()
    %56 = vector.shape_cast %55 : vector<8x8x8xf32> to vector<2x4x8x8xf32>
    %57 = tpu.transpose %56, [0, 2, 1, 3] : vector<2x4x8x8xf32> -> vector<2x8x4x8xf32>
    %58 = vector.shape_cast %57 : vector<2x8x4x8xf32> to vector<16x32xf32>
    %59 = arith.truncf %58 : vector<16x32xf32> to vector<16x32xbf16>
    %c0_26 = arith.constant 0 : index
    %c0_27 = arith.constant 0 : index
    %c0_28 = arith.constant 0 : index
    %60 = vector.load %arg5[%c0_26, %c0_27, %c0_28] : memref<1x32x32xbf16, #tpu.memory_space<vmem>>, vector<1x32x32xbf16>
    %61 = vector.shape_cast %60 : vector<1x32x32xbf16> to vector<32x32xbf16>
    %cst_29 = arith.constant dense<0.000000e+00> : vector<16x32xf32>
    %62 = tpu.matmul %59, %61, %cst_29 {dimension_numbers = #tpu.dot_dimension_numbers<[1], [0], [0], [1], [0, 0, 1, 1], [], []>} : vector<16x32xbf16>, vector<32x32xbf16>, vector<16x32xf32> -> vector<16x32xf32>
    %63 = vector.broadcast %7 : vector<1x32xf32> to vector<16x32xf32>
    %64 = arith.addf %62, %63 : vector<16x32xf32>
    %65 = arith.addf %16, %64 : vector<16x32xf32>
    %cst_30 = arith.constant dense<0.000000e+00> : vector<16xf32>
    %66 = vector.multi_reduction <add>, %65, %cst_30 [1] : vector<16x32xf32> to vector<16xf32>
    %67 = vector.shape_cast %66 : vector<16xf32> to vector<16x1xf32>
    %cst_31 = arith.constant 3.200000e+01 : f32
    %68 = vector.broadcast %cst_31 : f32 to vector<16x1xf32>
    %69 = arith.divf %67, %68 : vector<16x1xf32>
    %70 = vector.broadcast %69 : vector<16x1xf32> to vector<16x32xf32>
    %71 = arith.subf %65, %70 : vector<16x32xf32>
    %72 = arith.mulf %71, %71 : vector<16x32xf32>
    %cst_32 = arith.constant dense<0.000000e+00> : vector<16xf32>
    %73 = vector.multi_reduction <add>, %72, %cst_32 [1] : vector<16x32xf32> to vector<16xf32>
    %74 = vector.shape_cast %73 : vector<16xf32> to vector<16x1xf32>
    %cst_33 = arith.constant 3.200000e+01 : f32
    %75 = vector.broadcast %cst_33 : f32 to vector<16x1xf32>
    %76 = arith.divf %74, %75 : vector<16x1xf32>
    %cst_34 = arith.constant 9.99999974E-6 : f32
    %77 = vector.broadcast %cst_34 : f32 to vector<16x1xf32>
    %78 = arith.addf %76, %77 : vector<16x1xf32>
    %79 = math.rsqrt %78 : vector<16x1xf32>
    %80 = vector.broadcast %79 : vector<16x1xf32> to vector<16x32xf32>
    %81 = arith.mulf %71, %80 : vector<16x32xf32>
    %82 = vector.broadcast %9 : vector<1x32xf32> to vector<16x32xf32>
    %83 = arith.mulf %81, %82 : vector<16x32xf32>
    %84 = vector.broadcast %11 : vector<1x32xf32> to vector<16x32xf32>
    %85 = arith.addf %83, %84 : vector<16x32xf32>
    %86 = arith.truncf %85 : vector<16x32xf32> to vector<16x32xbf16>
    %c0_35 = arith.constant 0 : index
    %c0_36 = arith.constant 0 : index
    %c0_37 = arith.constant 0 : index
    %87 = vector.load %arg6[%c0_35, %c0_36, %c0_37] : memref<1x32x64xbf16, #tpu.memory_space<vmem>>, vector<1x32x64xbf16>
    %88 = vector.shape_cast %87 : vector<1x32x64xbf16> to vector<32x64xbf16>
    %cst_38 = arith.constant dense<0.000000e+00> : vector<16x64xf32>
    %89 = tpu.matmul %86, %88, %cst_38 {dimension_numbers = #tpu.dot_dimension_numbers<[1], [0], [0], [1], [0, 0, 1, 1], [], []>} : vector<16x32xbf16>, vector<32x64xbf16>, vector<16x64xf32> -> vector<16x64xf32>
    %cst_39 = arith.constant 0.000000e+00 : f32
    %90 = vector.broadcast %cst_39 : f32 to vector<16x64xf32>
    %91 = arith.maximumf %89, %90 : vector<16x64xf32>
    %92 = arith.truncf %91 : vector<16x64xf32> to vector<16x64xbf16>
    %c0_40 = arith.constant 0 : index
    %c0_41 = arith.constant 0 : index
    %c0_42 = arith.constant 0 : index
    %93 = vector.load %arg7[%c0_40, %c0_41, %c0_42] : memref<1x64x32xbf16, #tpu.memory_space<vmem>>, vector<1x64x32xbf16>
    %94 = vector.shape_cast %93 : vector<1x64x32xbf16> to vector<64x32xbf16>
    %cst_43 = arith.constant dense<0.000000e+00> : vector<16x32xf32>
    %95 = tpu.matmul %92, %94, %cst_43 {dimension_numbers = #tpu.dot_dimension_numbers<[1], [0], [0], [1], [0, 0, 1, 1], [], []>} : vector<16x64xbf16>, vector<64x32xbf16>, vector<16x32xf32> -> vector<16x32xf32>
    %96 = arith.addf %85, %95 : vector<16x32xf32>
    %cst_44 = arith.constant dense<0.000000e+00> : vector<16xf32>
    %97 = vector.multi_reduction <add>, %96, %cst_44 [1] : vector<16x32xf32> to vector<16xf32>
    %98 = vector.shape_cast %97 : vector<16xf32> to vector<16x1xf32>
    %cst_45 = arith.constant 3.200000e+01 : f32
    %99 = vector.broadcast %cst_45 : f32 to vector<16x1xf32>
    %100 = arith.divf %98, %99 : vector<16x1xf32>
    %101 = vector.broadcast %100 : vector<16x1xf32> to vector<16x32xf32>
    %102 = arith.subf %96, %101 : vector<16x32xf32>
    %103 = arith.mulf %102, %102 : vector<16x32xf32>
    %cst_46 = arith.constant dense<0.000000e+00> : vector<16xf32>
    %104 = vector.multi_reduction <add>, %103, %cst_46 [1] : vector<16x32xf32> to vector<16xf32>
    %105 = vector.shape_cast %104 : vector<16xf32> to vector<16x1xf32>
    %cst_47 = arith.constant 3.200000e+01 : f32
    %106 = vector.broadcast %cst_47 : f32 to vector<16x1xf32>
    %107 = arith.divf %105, %106 : vector<16x1xf32>
    %cst_48 = arith.constant 9.99999974E-6 : f32
    %108 = vector.broadcast %cst_48 : f32 to vector<16x1xf32>
    %109 = arith.addf %107, %108 : vector<16x1xf32>
    %110 = math.rsqrt %109 : vector<16x1xf32>
    %111 = vector.broadcast %110 : vector<16x1xf32> to vector<16x32xf32>
    %112 = arith.mulf %102, %111 : vector<16x32xf32>
    %113 = vector.broadcast %13 : vector<1x32xf32> to vector<16x32xf32>
    %114 = arith.mulf %112, %113 : vector<16x32xf32>
    %115 = vector.broadcast %15 : vector<1x32xf32> to vector<16x32xf32>
    %116 = arith.addf %114, %115 : vector<16x32xf32>
    %117 = vector.shape_cast %116 : vector<16x32xf32> to vector<2x8x32xf32>
    %c0_49 = arith.constant 0 : index
    %c0_50 = arith.constant 0 : index
    %c0_51 = arith.constant 0 : index
    %118 = vector.load %arg10[%c0_49, %c0_50, %c0_51] : memref<2x8x32xf32, #tpu.memory_space<vmem>>, vector<2x8x32xf32>
    tpu.vector_store %arg10[%c0_49, %c0_50, %c0_51], %117 {strides = array<i32>} : memref<2x8x32xf32, #tpu.memory_space<vmem>>, vector<2x8x32xf32>,
    %c1_i32 = arith.constant 1 : i32
    %119 = arith.cmpi eq, %arg1, %c1_i32 : i32
    %120 = arith.extui %119 : i1 to i32
    %c0_i32_52 = arith.constant 0 : i32
    %121 = arith.cmpi ne, %120, %c0_i32_52 : i32
    scf.if %121 {
      %c0_53 = arith.constant 0 : index
      %c0_54 = arith.constant 0 : index
      %c0_55 = arith.constant 0 : index
      %122 = vector.load %arg9[%c0_53, %c0_54, %c0_55] : memref<2x8x32xf32, #tpu.memory_space<vmem>>, vector<2x8x32xf32>
      tpu.vector_store %arg9[%c0_53, %c0_54, %c0_55], %117 {strides = array<i32>} : memref<2x8x32xf32, #tpu.memory_space<vmem>>, vector<2x8x32xf32>,
    } else {
    }
    return
  }
  func.func @transform_0(%arg0: i32, %arg1: i32) -> (i32, i32, i32) {
    %c0_i32 = arith.constant 0 : i32
    %c0_i32_0 = arith.constant 0 : i32
    %c0_i32_1 = arith.constant 0 : i32
    return %arg0, %c0_i32, %c0_i32_0 : i32, i32, i32
  }
  func.func @transform_1(%arg0: i32, %arg1: i32) -> (i32, i32, i32) {
    %c0_i32 = arith.constant 0 : i32
    %c0_i32_0 = arith.constant 0 : i32
    %c0_i32_1 = arith.constant 0 : i32
    return %arg0, %c0_i32, %c0_i32_0 : i32, i32, i32
  }
  func.func @transform_2(%arg0: i32, %arg1: i32) -> (i32, i32, i32) {
    %c0_i32 = arith.constant 0 : i32
    %c0_i32_0 = arith.constant 0 : i32
    %c0_i32_1 = arith.constant 0 : i32
    return %arg1, %c0_i32, %c0_i32_0 : i32, i32, i32
  }
  func.func @transform_3(%arg0: i32, %arg1: i32) -> (i32, i32, i32) {
    %c0_i32 = arith.constant 0 : i32
    %c0_i32_0 = arith.constant 0 : i32
    %c0_i32_1 = arith.constant 0 : i32
    return %arg1, %c0_i32, %c0_i32_0 : i32, i32, i32
  }
  func.func @transform_4(%arg0: i32, %arg1: i32) -> (i32, i32, i32) {
    %c0_i32 = arith.constant 0 : i32
    %c0_i32_0 = arith.constant 0 : i32
    %c0_i32_1 = arith.constant 0 : i32
    return %arg1, %c0_i32, %c0_i32_0 : i32, i32, i32
  }
  func.func @transform_5(%arg0: i32, %arg1: i32) -> (i32, i32, i32) {
    %c0_i32 = arith.constant 0 : i32
    %c0_i32_0 = arith.constant 0 : i32
    %c0_i32_1 = arith.constant 0 : i32
    return %arg1, %c0_i32, %c0_i32_0 : i32, i32, i32
  }
  func.func @transform_6(%arg0: i32, %arg1: i32) -> (i32, i32, i32) {
    %c0_i32 = arith.constant 0 : i32
    %c0_i32_0 = arith.constant 0 : i32
    %c0_i32_1 = arith.constant 0 : i32
    return %arg1, %c0_i32, %c0_i32_0 : i32, i32, i32
  }
  func.func @transform_7(%arg0: i32, %arg1: i32) -> (i32, i32, i32) {
    %c0_i32 = arith.constant 0 : i32
    %c0_i32_0 = arith.constant 0 : i32
    %c0_i32_1 = arith.constant 0 : i32
    return %arg0, %c0_i32, %c0_i32_0 : i32, i32, i32
  }
}

</mosaic_0001>

<llo_original>
// kernel: tpu_custom_call.1
$region0: #{tpu_custom_call.1}
  #allocation0 [shape = 'u32[]', space=smem, size = 0x4, offset = 0x4, fixed_abs, tag = 'smem constant byte address 0x4 - core index']
  #allocation1 [shape = 'u32[72,128]{1,0:T(1,128)}', space=vmem, size = 0x9000, scoped, tag = 'internal scratch']
  #allocation2 [shape = 'f32[2,8,32]{2,1,0:T(8,128)}', space=vmem, size = 0x2000, scoped, tag = 'scratch operand']
  %s0 = inlined_call_operand.hbm [shape: f32[2,8,32], index: 0, kind: input, shape index: {}]
  %s1 = inlined_call_operand.hbm [shape: f32[2,1,8], index: 1, kind: input, shape index: {}]
  %s2 = inlined_call_operand.vmem [shape: bf16[2,32,96], index: 2, kind: input, shape index: {}]
  %s3 = inlined_call_operand.vmem [shape: bf16[2,32,32], index: 3, kind: input, shape index: {}]
  %s4 = inlined_call_operand.vmem [shape: bf16[2,32,64], index: 4, kind: input, shape index: {}]
  %s5 = inlined_call_operand.vmem [shape: bf16[2,64,32], index: 5, kind: input, shape index: {}]
  %s6 = inlined_call_operand.hbm [shape: f32[2,8,96], index: 6, kind: input, shape index: {}]
  %s7 = inlined_call_operand.hbm [shape: f32[2,8,32], index: 7, kind: output, shape index: {}]
  %s8 = sld [smem:[#allocation0]]
  $region81: #{tpu_custom_call.1} parent=0
    _
  %s10 = ssub.s32 1, %s8
  %s11 = scalar_select 0, %s10, %s8
  $region1: #{tpu_custom_call.1} parent=0
    #allocation3 [shape = 'u8[8192]{0}', space=vmem, size = 0x2000, scoped, tag = 'input window, operand 0, single buffered']
    #allocation4 [shape = 's32[2]{0}', space=sflag, size = 0x8, scoped, tag = 'scoped memory for tpu_custom_call.1']
    #allocation5 [shape = 's32[2]{0}', space=sflag, size = 0x8, scoped, tag = 'scoped memory for tpu_custom_call.1']
    #allocation6 [shape = 'u8[1024]{0}', space=vmem, size = 0x400, scoped, tag = 'input window, operand 1, single buffered']
    #allocation7 [shape = 's32[1]{0}', space=sflag, size = 0x4, scoped, tag = 'scoped memory for tpu_custom_call.1']
    #allocation8 [shape = 'u8[8192]{0}', space=vmem, size = 0x2000, scoped, tag = 'input window, operand 6']
    #allocation9 [shape = 'u8[8192]{0}', space=vmem, size = 0x2000, scoped, tag = 'output window, operand 0, single buffered']
    %12 = vsyncpa [#allocation4], 0
    %13 = vsyncpa [#allocation7], 0
    %14 = vsyncpa [#allocation5], 0
    loop: start=0, step=1, limit=4
    $region2: #{tpu_custom_call.1} parent=1 // loop_pre_header
      _
    $region3: #{tpu_custom_call.1} parent=1 // loop_header
      %s16 = sphi 0, %s20
      %p17 = scmp.ge.s32.totalorder %s16, 4
      %s23 = sphi 0, %s35
      %s24 = sphi 0, %s31
      %s25 = sphi 0, %s23
      %s26 = sphi 0, %s24
      %s27 = sphi 0, %s25
      %s28 = sphi 0, %s26
      %s38 = sphi 0, %s40
      %s41 = sphi 0, %s38
      %s42 = sphi 0, %s41
      %s58 = sphi 0, %s42
      %s64 = sphi 0, %s66
      %s67 = sphi 0, %s64
      %s68 = sphi 0, %s67
      %s84 = sphi 0, %s68
      %s90 = sphi 0, %s92
      %s93 = sphi 0, %s90
      %s94 = sphi 0, %s93
      %s110 = sphi 0, %s94
      %s116 = sphi 0, %s118
      %s119 = sphi 0, %s116
      %s120 = sphi 0, %s119
      %s136 = sphi 0, %s120
      %s142 = sphi 0, %s144
      %s145 = sphi 0, %s142
      %s146 = sphi 0, %s145
      %s162 = sphi 0, %s146
      %s168 = sphi 0, %s170
      %s171 = sphi 0, %s168
      %s172 = sphi 0, %s171
      %s188 = sphi 0, %s172
      %s194 = sphi 0, %s196
      %s197 = sphi 0, %s194
      %s198 = sphi 0, %s197
      %s214 = sphi 0, %s198
      %s220 = sphi 0, %s222
      %s223 = sphi 0, %s220
      %s224 = sphi 0, %s223
      %s240 = sphi 0, %s224
    $region4: #{tpu_custom_call.1} parent=1 // loop_header_branch
      %19 = sbr.rel (%p17) target = $region8
    $region5: #{tpu_custom_call.1} parent=1 // loop_body
      %s21 = ssub.s32 %s16, 1
      %s22 = ssub.s32 %s16, 2
      %s29 = sadd.s32 1, %s24
      %p30 = scmp.ge.s32.totalorder %s29, 2
      %s31 = scalar_select %p30, 0, %s29
      %s32 = sadd.s32 1, %s23
      %s33 = scalar_select %p30, %s32, %s23
      %p34 = scmp.ge.s32.totalorder %s33, 1
      %s35 = scalar_select %p34, 0, %s33
      %s36 = ssub.s32 %s23, %s35
      %p37 = scmp.eq.s32.totalorder %s36, 0
      %s39 = sadd.s32 %s38, 1
      %s40 = scalar_select %p37, %s38, %s39
      %p43 = pneg %p37
      %p44 = scmp.eq.s32.totalorder %s16, 1
      %p45 = por %p43, %p44
      %p46 = scmp.ne.s32.totalorder %s38, %s41
      %p47 = scmp.eq.s32.totalorder %s16, 0
      %p48 = por %p46, %p47
      %p49 = scmp.ne.s32.totalorder %s38, %s41
      %p50 = scmp.eq.s32.totalorder %s21, 1
      %p51 = por %p49, %p50
      %p52 = scmp.ne.s32.totalorder %s41, %s42
      %p53 = scmp.eq.s32.totalorder %s21, 0
      %p54 = por %p52, %p53
      %p55 = scmp.ne.s32.totalorder %s41, %s42
      %p56 = scmp.eq.s32.totalorder %s22, 1
      %p57 = por %p55, %p56
      %p59 = scmp.ne.s32.totalorder %s42, %s58
      %p60 = scmp.eq.s32.totalorder %s22, 0
      %p61 = por %p59, %p60
      %s62 = ssub.s32 %s23, %s35
      %p63 = scmp.eq.s32.totalorder %s62, 0
      %s65 = sadd.s32 %s64, 1
      %s66 = scalar_select %p63, %s64, %s65
      %p69 = pneg %p63
      %p70 = scmp.eq.s32.totalorder %s16, 1
      %p71 = por %p69, %p70
      %p72 = scmp.ne.s32.totalorder %s64, %s67
      %p73 = scmp.eq.s32.totalorder %s16, 0
      %p74 = por %p72, %p73
      %p75 = scmp.ne.s32.totalorder %s64, %s67
      %p76 = scmp.eq.s32.totalorder %s21, 1
      %p77 = por %p75, %p76
      %p78 = scmp.ne.s32.totalorder %s67, %s68
      %p79 = scmp.eq.s32.totalorder %s21, 0
      %p80 = por %p78, %p79
      %p81 = scmp.ne.s32.totalorder %s67, %s68
      %p82 = scmp.eq.s32.totalorder %s22, 1
      %p83 = por %p81, %p82
      %p85 = scmp.ne.s32.totalorder %s68, %s84
      %p86 = scmp.eq.s32.totalorder %s22, 0
      %p87 = por %p85, %p86
      %s88 = ssub.s32 %s24, %s31
      %p89 = scmp.eq.s32.totalorder %s88, 0
      %s91 = sadd.s32 %s90, 1
      %s92 = scalar_select %p89, %s90, %s91
      %p95 = pneg %p89
      %p96 = scmp.eq.s32.totalorder %s16, 1
      %p97 = por %p95, %p96
      %p98 = scmp.ne.s32.totalorder %s90, %s93
      %p99 = scmp.eq.s32.totalorder %s16, 0
      %p100 = por %p98, %p99
      %p101 = scmp.ne.s32.totalorder %s90, %s93
      %p102 = scmp.eq.s32.totalorder %s21, 1
      %p103 = por %p101, %p102
      %p104 = scmp.ne.s32.totalorder %s93, %s94
      %p105 = scmp.eq.s32.totalorder %s21, 0
      %p106 = por %p104, %p105
      %p107 = scmp.ne.s32.totalorder %s93, %s94
      %p108 = scmp.eq.s32.totalorder %s22, 1
      %p109 = por %p107, %p108
      %p111 = scmp.ne.s32.totalorder %s94, %s110
      %p112 = scmp.eq.s32.totalorder %s22, 0
      %p113 = por %p111, %p112
      %s114 = ssub.s32 %s24, %s31
      %p115 = scmp.eq.s32.totalorder %s114, 0
      %s117 = sadd.s32 %s116, 1
      %s118 = scalar_select %p115, %s116, %s117
      %p121 = pneg %p115
      %p122 = scmp.eq.s32.totalorder %s16, 1
      %p123 = por %p121, %p122
      %p124 = scmp.ne.s32.totalorder %s116, %s119
      %p125 = scmp.eq.s32.totalorder %s16, 0
      %p126 = por %p124, %p125
      %p127 = scmp.ne.s32.totalorder %s116, %s119
      %p128 = scmp.eq.s32.totalorder %s21, 1
      %p129 = por %p127, %p128
      %p130 = scmp.ne.s32.totalorder %s119, %s120
      %p131 = scmp.eq.s32.totalorder %s21, 0
      %p132 = por %p130, %p131
      %p133 = scmp.ne.s32.totalorder %s119, %s120
      %p134 = scmp.eq.s32.totalorder %s22, 1
      %p135 = por %p133, %p134
      %p137 = scmp.ne.s32.totalorder %s120, %s136
      %p138 = scmp.eq.s32.totalorder %s22, 0
      %p139 = por %p137, %p138
      %s140 = ssub.s32 %s24, %s31
      %p141 = scmp.eq.s32.totalorder %s140, 0
      %s143 = sadd.s32 %s142, 1
      %s144 = scalar_select %p141, %s142, %s143
      %p147 = pneg %p141
      %p148 = scmp.eq.s32.totalorder %s16, 1
      %p149 = por %p147, %p148
      %p150 = scmp.ne.s32.totalorder %s142, %s145
      %p151 = scmp.eq.s32.totalorder %s16, 0
      %p152 = por %p150, %p151
      %p153 = scmp.ne.s32.totalorder %s142, %s145
      %p154 = scmp.eq.s32.totalorder %s21, 1
      %p155 = por %p153, %p154
      %p156 = scmp.ne.s32.totalorder %s145, %s146
      %p157 = scmp.eq.s32.totalorder %s21, 0
      %p158 = por %p156, %p157
      %p159 = scmp.ne.s32.totalorder %s145, %s146
      %p160 = scmp.eq.s32.totalorder %s22, 1
      %p161 = por %p159, %p160
      %p163 = scmp.ne.s32.totalorder %s146, %s162
      %p164 = scmp.eq.s32.totalorder %s22, 0
      %p165 = por %p163, %p164
      %s166 = ssub.s32 %s24, %s31
      %p167 = scmp.eq.s32.totalorder %s166, 0
      %s169 = sadd.s32 %s168, 1
      %s170 = scalar_select %p167, %s168, %s169
      %p173 = pneg %p167
      %p174 = scmp.eq.s32.totalorder %s16, 1
      %p175 = por %p173, %p174
      %p176 = scmp.ne.s32.totalorder %s168, %s171
      %p177 = scmp.eq.s32.totalorder %s16, 0
      %p178 = por %p176, %p177
      %p179 = scmp.ne.s32.totalorder %s168, %s171
      %p180 = scmp.eq.s32.totalorder %s21, 1
      %p181 = por %p179, %p180
      %p182 = scmp.ne.s32.totalorder %s171, %s172
      %p183 = scmp.eq.s32.totalorder %s21, 0
      %p184 = por %p182, %p183
      %p185 = scmp.ne.s32.totalorder %s171, %s172
      %p186 = scmp.eq.s32.totalorder %s22, 1
      %p187 = por %p185, %p186
      %p189 = scmp.ne.s32.totalorder %s172, %s188
      %p190 = scmp.eq.s32.totalorder %s22, 0
      %p191 = por %p189, %p190
      %s192 = ssub.s32 %s24, %s31
      %p193 = scmp.eq.s32.totalorder %s192, 0
      %s195 = sadd.s32 %s194, 1
      %s196 = scalar_select %p193, %s194, %s195
      %p199 = pneg %p193
      %p200 = scmp.eq.s32.totalorder %s16, 1
      %p201 = por %p199, %p200
      %p202 = scmp.ne.s32.totalorder %s194, %s197
      %p203 = scmp.eq.s32.totalorder %s16, 0
      %p204 = por %p202, %p203
      %p205 = scmp.ne.s32.totalorder %s194, %s197
      %p206 = scmp.eq.s32.totalorder %s21, 1
      %p207 = por %p205, %p206
      %p208 = scmp.ne.s32.totalorder %s197, %s198
      %p209 = scmp.eq.s32.totalorder %s21, 0
      %p210 = por %p208, %p209
      %p211 = scmp.ne.s32.totalorder %s197, %s198
      %p212 = scmp.eq.s32.totalorder %s22, 1
      %p213 = por %p211, %p212
      %p215 = scmp.ne.s32.totalorder %s198, %s214
      %p216 = scmp.eq.s32.totalorder %s22, 0
      %p217 = por %p215, %p216
      %s218 = ssub.s32 %s23, %s35
      %p219 = scmp.eq.s32.totalorder %s218, 0
      %s221 = sadd.s32 %s220, 1
      %s222 = scalar_select %p219, %s220, %s221
      %p225 = pneg %p219
      %p226 = scmp.eq.s32.totalorder %s16, 1
      %p227 = por %p225, %p226
      %p228 = scmp.ne.s32.totalorder %s220, %s223
      %p229 = scmp.eq.s32.totalorder %s16, 0
      %p230 = por %p228, %p229
      %p231 = scmp.ne.s32.totalorder %s220, %s223
      %p232 = scmp.eq.s32.totalorder %s21, 1
      %p233 = por %p231, %p232
      %p234 = scmp.ne.s32.totalorder %s223, %s224
      %p235 = scmp.eq.s32.totalorder %s21, 0
      %p236 = por %p234, %p235
      %p237 = scmp.ne.s32.totalorder %s223, %s224
      %p238 = scmp.eq.s32.totalorder %s22, 1
      %p239 = por %p237, %p238
      %p241 = scmp.ne.s32.totalorder %s224, %s240
      %p242 = scmp.eq.s32.totalorder %s22, 0
      %p243 = por %p241, %p242
      %p244 = scmp.le.s32.totalorder 1, %s16
      %p245 = scmp.lt.s32.totalorder %s16, 3
      %p246 = pnand %p244, %p245
      %p247 = pneg %p246
      // Predicated region
      $region9: #{tpu_custom_call.1} parent=5 // pred_check
        _
      $region10: #{tpu_custom_call.1} parent=5 // pred_check_branch
        %249 = sbr.rel (%p246) target = $region12
      $region11: #{tpu_custom_call.1} parent=5 // pred_region
        %s250 = ssub.s32 %s16, 1
        // Predicated region
        $region13: #{tpu_custom_call.1} parent=11 // pred_check
          %p251 = pneg %p54
        $region14: #{tpu_custom_call.1} parent=11 // pred_check_branch
          %253 = sbr.rel (%p251) target = $region16
        $region15: #{tpu_custom_call.1} parent=11 // pred_region
          %s254 = smul.u32 2, %s25
          %256 = vsyncadd [#allocation4], 0
          %s257 = smul.addr %s254, 8
          %s258 = scalar_lea.hbm %s0, %s257
          %s259 = sshll.u32 %s258, 4
          %s260 = int_to_ptr.hbm [resolvable:$true] %s259
          %s261 = sshll.u32 [#allocation3], 4
          %s262 = int_to_ptr.vmem [resolvable:$true] %s261
          %267 = dma.hbm_to_vmem [thread:$0]  %s260, 256, %s262, [#allocation4], 128, 128, 8
        $region16: #{tpu_custom_call.1} parent=11 // pred_fallthru
          _
        // Predicated region
        $region17: #{tpu_custom_call.1} parent=11 // pred_check
          %p268 = pneg %p80
        $region18: #{tpu_custom_call.1} parent=11 // pred_check_branch
          %270 = sbr.rel (%p268) target = $region20
        $region19: #{tpu_custom_call.1} parent=11 // pred_region
          %s271 = smul.u32 2, %s25
          %273 = vsyncadd [#allocation7], 0
          %s274 = scalar_lea.hbm %s1, %s271
          %s275 = sshll.u32 %s274, 4
          %s276 = int_to_ptr.hbm [resolvable:$true] %s275
          %s277 = sshll.u32 [#allocation6], 4
          %s278 = int_to_ptr.vmem [resolvable:$true] %s277
          %283 = dma.hbm_to_vmem [thread:$0]  %s276, 32, %s278, [#allocation7], 16, 16, 1
        $region20: #{tpu_custom_call.1} parent=11 // pred_fallthru
          _
      $region12: #{tpu_custom_call.1} parent=5 // pred_fallthru
        _
      %p284 = scmp.lt.s32.totalorder %s16, 2
      // Predicated region
      $region21: #{tpu_custom_call.1} parent=5 // pred_check
        %p285 = pneg %p284
      $region22: #{tpu_custom_call.1} parent=5 // pred_check_branch
        %287 = sbr.rel (%p285) target = $region24
      $region23: #{tpu_custom_call.1} parent=5 // pred_region
        // Predicated region
        $region25: #{tpu_custom_call.1} parent=23 // pred_check
          %p288 = pneg %p100
        $region26: #{tpu_custom_call.1} parent=23 // pred_check_branch
          %290 = sbr.rel (%p288) target = $region28
        $region27: #{tpu_custom_call.1} parent=23 // pred_region
          %p291 = scmp.lt.s32.totalorder %s24, 1
          %s292 = scalar_select %p291, %s24, 1
          %s293 = smul.addr %s292, 4
          %s294 = smul.addr %s293, 4
          %s295 = scalar_lea.vmem %s2, %s294
        $region28: #{tpu_custom_call.1} parent=23 // pred_fallthru
          _
        // Predicated region
        $region29: #{tpu_custom_call.1} parent=23 // pred_check
          %p296 = pneg %p126
        $region30: #{tpu_custom_call.1} parent=23 // pred_check_branch
          %298 = sbr.rel (%p296) target = $region32
        $region31: #{tpu_custom_call.1} parent=23 // pred_region
          %p299 = scmp.lt.s32.totalorder %s24, 1
          %s300 = scalar_select %p299, %s24, 1
          %s301 = smul.addr %s300, 4
          %s302 = smul.addr %s301, 4
          %s303 = scalar_lea.vmem %s3, %s302
        $region32: #{tpu_custom_call.1} parent=23 // pred_fallthru
          _
        // Predicated region
        $region33: #{tpu_custom_call.1} parent=23 // pred_check
          %p304 = pneg %p152
        $region34: #{tpu_custom_call.1} parent=23 // pred_check_branch
          %306 = sbr.rel (%p304) target = $region36
        $region35: #{tpu_custom_call.1} parent=23 // pred_region
          %p307 = scmp.lt.s32.totalorder %s24, 1
          %s308 = scalar_select %p307, %s24, 1
          %s309 = smul.addr %s308, 4
          %s310 = smul.addr %s309, 4
          %s311 = scalar_lea.vmem %s4, %s310
        $region36: #{tpu_custom_call.1} parent=23 // pred_fallthru
          _
        // Predicated region
        $region37: #{tpu_custom_call.1} parent=23 // pred_check
          %p312 = pneg %p178
        $region38: #{tpu_custom_call.1} parent=23 // pred_check_branch
          %314 = sbr.rel (%p312) target = $region40
        $region39: #{tpu_custom_call.1} parent=23 // pred_region
          %p315 = scmp.lt.s32.totalorder %s24, 1
          %s316 = scalar_select %p315, %s24, 1
          %s317 = smul.addr %s316, 8
          %s318 = smul.addr %s317, 4
          %s319 = scalar_lea.vmem %s5, %s318
        $region40: #{tpu_custom_call.1} parent=23 // pred_fallthru
          _
        // Predicated region
        $region41: #{tpu_custom_call.1} parent=23 // pred_check
          %p320 = pneg %p204
        $region42: #{tpu_custom_call.1} parent=23 // pred_check_branch
          %322 = sbr.rel (%p320) target = $region44
        $region43: #{tpu_custom_call.1} parent=23 // pred_region
          %s323 = sand.u32 %s16, 1
          %s324 = scalar_lea.sflag [#allocation4], %s323
          %s325 = sand.u32 %s194, 1
          %s326 = smul.addr %s325, 8
          %s327 = scalar_lea.vmem [#allocation8], %s326
          %329 = vsyncadd %s324, 0
          %s330 = smul.addr %s24, 8
          %s331 = scalar_lea.hbm %s6, %s330
          %s333 = sshll.u32 %s331, 4
          %s334 = int_to_ptr.hbm [resolvable:$true] %s333
          %s335 = sshll.u32 %s327, 4
          %s336 = int_to_ptr.vmem [resolvable:$true] %s335
          %338 = dma.hbm_to_vmem [thread:$0]  %s334, 128, %s336, %s324
        $region44: #{tpu_custom_call.1} parent=23 // pred_fallthru
          _
      $region24: #{tpu_custom_call.1} parent=5 // pred_fallthru
        _
      %p339 = scmp.le.s32.totalorder 1, %s16
      %p340 = scmp.lt.s32.totalorder %s16, 3
      %p341 = pnand %p339, %p340
      %p342 = pneg %p341
      // Predicated region
      $region45: #{tpu_custom_call.1} parent=5 // pred_check
        _
      $region46: #{tpu_custom_call.1} parent=5 // pred_check_branch
        %344 = sbr.rel (%p341) target = $region48
      $region47: #{tpu_custom_call.1} parent=5 // pred_region
        %s345 = ssub.s32 %s16, 1
        // Predicated region
        $region49: #{tpu_custom_call.1} parent=47 // pred_check
          %p346 = pneg %p54
        $region50: #{tpu_custom_call.1} parent=47 // pred_check_branch
          %348 = sbr.rel (%p346) target = $region52
        $region51: #{tpu_custom_call.1} parent=47 // pred_region
          %350 = dma.done [#allocation4], 256
        $region52: #{tpu_custom_call.1} parent=47 // pred_fallthru
          _
        // Predicated region
        $region53: #{tpu_custom_call.1} parent=47 // pred_check
          %p351 = pneg %p80
        $region54: #{tpu_custom_call.1} parent=47 // pred_check_branch
          %353 = sbr.rel (%p351) target = $region56
        $region55: #{tpu_custom_call.1} parent=47 // pred_region
          %355 = dma.done [#allocation7], 32
        $region56: #{tpu_custom_call.1} parent=47 // pred_fallthru
          _
        %s356 = sand.u32 %s21, 1
        %s357 = scalar_lea.sflag [#allocation4], %s356
        %s358 = sand.u32 %s197, 1
        %s359 = smul.addr %s358, 8
        %s360 = scalar_lea.vmem [#allocation8], %s359
        // Predicated region
        $region57: #{tpu_custom_call.1} parent=47 // pred_check
          %p361 = pneg %p210
        $region58: #{tpu_custom_call.1} parent=47 // pred_check_branch
          %363 = sbr.rel (%p361) target = $region60
        $region59: #{tpu_custom_call.1} parent=47 // pred_region
          %365 = dma.done %s357, 128
        $region60: #{tpu_custom_call.1} parent=47 // pred_fallthru
          _
        %p366 = pneg %p54
        %p367 = pneg %p51
        %p368 = pneg %p80
        %p369 = pneg %p77
        %p370 = scmp.lt.s32.totalorder %s26, 1
        %s371 = scalar_select %p370, %s26, 1
        %s372 = smul.addr %s371, 4
        %s373 = smul.addr %s372, 4
        %s374 = scalar_lea.vmem %s2, %s373
        %p375 = pneg %p106
        %p376 = pneg %p103
        %p377 = scmp.lt.s32.totalorder %s26, 1
        %s378 = scalar_select %p377, %s26, 1
        %s379 = smul.addr %s378, 4
        %s380 = smul.addr %s379, 4
        %s381 = scalar_lea.vmem %s3, %s380
        %p382 = pneg %p132
        %p383 = pneg %p129
        %p384 = scmp.lt.s32.totalorder %s26, 1
        %s385 = scalar_select %p384, %s26, 1
        %s386 = smul.addr %s385, 4
        %s387 = smul.addr %s386, 4
        %s388 = scalar_lea.vmem %s4, %s387
        %p389 = pneg %p158
        %p390 = pneg %p155
        %p391 = scmp.lt.s32.totalorder %s26, 1
        %s392 = scalar_select %p391, %s26, 1
        %s393 = smul.addr %s392, 8
        %s394 = smul.addr %s393, 4
        %s395 = scalar_lea.vmem %s5, %s394
        %p396 = pneg %p184
        %p397 = pneg %p181
        %s398 = sand.u32 %s21, 1
        %s399 = scalar_lea.sflag [#allocation4], %s398
        %s400 = sand.u32 %s197, 1
        %s401 = smul.addr %s400, 8
        %s402 = scalar_lea.vmem [#allocation8], %s401
        %p403 = pneg %p210
        %p404 = pneg %p207
        %p405 = pneg %p236
        %p406 = pneg %p233
        %s407 = smul.u32 2, %s25
        %s408 = smul.u32 2, %s25
        %p409 = scmp.lt.s32.totalorder %s26, 1
        %s410 = scalar_select %p409, %s26, 1
        %s411 = smul.addr %s410, 4
        %s412 = smul.addr %s411, 4
        %s413 = scalar_lea.vmem %s2, %s412
        %p414 = scmp.lt.s32.totalorder %s26, 1
        %s415 = scalar_select %p414, %s26, 1
        %s416 = smul.addr %s415, 4
        %s417 = smul.addr %s416, 4
        %s418 = scalar_lea.vmem %s3, %s417
        %p419 = scmp.lt.s32.totalorder %s26, 1
        %s420 = scalar_select %p419, %s26, 1
        %s421 = smul.addr %s420, 4
        %s422 = smul.addr %s421, 4
        %s423 = scalar_lea.vmem %s4, %s422
        %p424 = scmp.lt.s32.totalorder %s26, 1
        %s425 = scalar_select %p424, %s26, 1
        %s426 = smul.addr %s425, 8
        %s427 = smul.addr %s426, 4
        %s428 = scalar_lea.vmem %s5, %s427
        %s429 = smul.u32 2, %s25
        %p431 = scmp.eq.s32.totalorder %s26, 0
        // Predicated region
        $region61: #{tpu_custom_call.1} parent=47 // pred_check
          %p432 = pneg %p431
        $region62: #{tpu_custom_call.1} parent=47 // pred_check_branch
          %434 = sbr.rel (%p432) target = $region64
        $region63: #{tpu_custom_call.1} parent=47 // pred_region
          %v435 = vld [vmem:[#allocation3] sm:$0xff]
          %v436 = vld [vmem:[#allocation3 + $0x8] sm:$0xff]
          %vm437 = vcmask 261120
          %438 = vst.msk [vmem:[#allocation2] sm:$0xff] %vm437, %v435
          %439 = vst.msk [vmem:[#allocation2 + $0x8] sm:$0xff] %vm437, %v436
        $region64: #{tpu_custom_call.1} parent=47 // pred_fallthru
          _
        %v440 = vld [vmem:[#allocation2] sm:$0xff]
        %v441 = vld [vmem:[#allocation2 + $0x8] sm:$0xff]
        %v442 = vld [vmem:[%s360] sm:$0x1]
        %v443 = vld [vmem:[%s360 + $0x1] sm:$0x1]
        %v444 = vld [vmem:[%s360 + $0x2] sm:$0x1]
        %v445 = vld [vmem:[%s360 + $0x3] sm:$0x1]
        %v446 = vld [vmem:[%s360 + $0x4] sm:$0x1]
        %v447 = vld [vmem:[%s360 + $0x5] sm:$0x1]
        %v448 = vpack.c.bf16 %v441, %v440
        %v449 = vld [vmem:[%s413] sm:$0xf]
        %v450 = vld [vmem:[%s413 + $0x4] sm:$0xf]
        %v451 = vld [vmem:[%s413 + $0x8] sm:$0xf]
        %v452 = vld [vmem:[%s413 + $0xc] sm:$0xf]
        %v453 = vperm.slane %v442, 0
        %v458 = vunpack.c.l.b16 %v449
        %v459 = vunpack.c.l.b16 %v450
        %v460 = vunpack.c.l.b16 %v451
        %v461 = vunpack.c.l.b16 %v452
        %v462 = vpack.c.b16 %v459, %v458
        %v463 = vpack.c.b16 %v461, %v460
        %vm466 = vcmask 261120
        %v468 = vsel %vm466, %v448, 0
        %470 = vmatpush.bf16.msra.mxu0 0
        %471 = vmatpush.bf16.msra.mxu0 0
        %472 = vmatpush.bf16.msra.mxu0 0
        %473 = vmatpush.bf16.msra.mxu0 0
        %474 = vmatpush.bf16.msra.mxu0 0
        %475 = vmatpush.bf16.msra.mxu0 0
        %476 = vmatpush.bf16.msra.mxu0 %v463
        %477 = vmatpush.bf16.msra.mxu0 %v462
        %478 = vmatmul.bf16.gmra.mxu0 %v468
        %v479 = vpop.f32.mrf.mxu0
        %v480 = vadd.f32 %v453, %v479
        %v481 = vpop.f32.mrf.mxu0
        %v482 = vadd.f32 %v453, %v481
        %483 = vdwg.mxu0
        %486 = vrot.lane.b32.xlu0 %v480, 120
        %v487 = vpop.permute.xlu0 %486
        %488 = vrot.lane.b32.xlu0 %v482, 120
        %v489 = vpop.permute.xlu0 %488
        %492 = vrot.lane.b32.xlu0 %v480, 112
        %v493 = vpop.permute.xlu0 %492
        %494 = vrot.lane.b32.xlu0 %v482, 112
        %v495 = vpop.permute.xlu0 %494
        %498 = vrot.lane.b32.xlu0 %v480, 104
        %v499 = vpop.permute.xlu0 %498
        %500 = vrot.lane.b32.xlu0 %v482, 104
        %v501 = vpop.permute.xlu0 %500
        %v504 = vrot.slane %v493, 4
        %vm505 = vcmask 1047556
        %v506 = vsel %vm505, %v504, %v480
        %v507 = vrot.slane %v480, 4
        %v508 = vsel %vm505, %v493, %v507
        %v510 = vunpack.c.l.s4 1983009808
        %v511 = vunpack.c.0.s8 %v510
        %v512 = vperm.slane %v506, %v511
        %v514 = vunpack.c.l.s4 1983009808
        %v515 = vunpack.c.0.s8 %v514
        %v516 = vperm.slane %v508, %v515
        %v517 = vrot.slane %v499, 4
        %v518 = vsel %vm505, %v517, %v487
        %v519 = vrot.slane %v487, 4
        %v520 = vsel %vm505, %v499, %v519
        %v522 = vunpack.c.l.s4 1983009808
        %v523 = vunpack.c.0.s8 %v522
        %v524 = vperm.slane %v518, %v523
        %v526 = vunpack.c.l.s4 1983009808
        %v527 = vunpack.c.0.s8 %v526
        %v528 = vperm.slane %v520, %v527
        %v529 = vrot.slane %v524, 4
        %v530 = vsel %vm505, %v529, %v512
        %v531 = vrot.slane %v512, 4
        %v532 = vsel %vm505, %v524, %v531
        %v534 = vunpack.c.l.s4 1934713408
        %v535 = vunpack.c.0.s8 %v534
        %v536 = vperm.slane %v530, %v535
        %v538 = vunpack.c.l.s4 1934713408
        %v539 = vunpack.c.0.s8 %v538
        %v540 = vperm.slane %v532, %v539
        %v541 = vrot.slane %v528, 4
        %v542 = vsel %vm505, %v541, %v516
        %v543 = vrot.slane %v516, 4
        %v544 = vsel %vm505, %v528, %v543
        %v546 = vunpack.c.l.s4 1934713408
        %v547 = vunpack.c.0.s8 %v546
        %v548 = vperm.slane %v542, %v547
        %v550 = vunpack.c.l.s4 1934713408
        %v551 = vunpack.c.0.s8 %v550
        %v552 = vperm.slane %v544, %v551
        %v553 = vrot.slane %v536, 4
        %v554 = vsel %vm505, 0.0, %v553
        %v555 = vrot.slane %v540, 4
        %v556 = vsel %vm505, 0.0, %v555
        %v557 = vrot.slane %v548, 4
        %v558 = vsel %vm505, 0.0, %v557
        %v559 = vrot.slane %v552, 4
        %v560 = vsel %vm505, 0.0, %v559
        %v561 = vrot.slane %v495, 4
        %v562 = vsel %vm505, %v561, %v482
        %v563 = vrot.slane %v482, 4
        %v564 = vsel %vm505, %v495, %v563
        %v566 = vunpack.c.l.s4 1983009808
        %v567 = vunpack.c.0.s8 %v566
        %v568 = vperm.slane %v562, %v567
        %v570 = vunpack.c.l.s4 1983009808
        %v571 = vunpack.c.0.s8 %v570
        %v572 = vperm.slane %v564, %v571
        %v573 = vrot.slane %v501, 4
        %v574 = vsel %vm505, %v573, %v489
        %v575 = vrot.slane %v489, 4
        %v576 = vsel %vm505, %v501, %v575
        %v578 = vunpack.c.l.s4 1983009808
        %v579 = vunpack.c.0.s8 %v578
        %v580 = vperm.slane %v574, %v579
        %v582 = vunpack.c.l.s4 1983009808
        %v583 = vunpack.c.0.s8 %v582
        %v584 = vperm.slane %v576, %v583
        %v585 = vrot.slane %v580, 4
        %v586 = vsel %vm505, %v585, %v568
        %v587 = vrot.slane %v568, 4
        %v588 = vsel %vm505, %v580, %v587
        %v590 = vunpack.c.l.s4 1934713408
        %v591 = vunpack.c.0.s8 %v590
        %v592 = vperm.slane %v586, %v591
        %v594 = vunpack.c.l.s4 1934713408
        %v595 = vunpack.c.0.s8 %v594
        %v596 = vperm.slane %v588, %v595
        %v597 = vrot.slane %v584, 4
        %v598 = vsel %vm505, %v597, %v572
        %v599 = vrot.slane %v572, 4
        %v600 = vsel %vm505, %v584, %v599
        %v602 = vunpack.c.l.s4 1934713408
        %v603 = vunpack.c.0.s8 %v602
        %v604 = vperm.slane %v598, %v603
        %v606 = vunpack.c.l.s4 1934713408
        %v607 = vunpack.c.0.s8 %v606
        %v608 = vperm.slane %v600, %v607
        %v609 = vrot.slane %v592, 4
        %v610 = vsel %vm505, 0.0, %v609
        %v611 = vrot.slane %v596, 4
        %v612 = vsel %vm505, 0.0, %v611
        %v613 = vrot.slane %v604, 4
        %v614 = vsel %vm505, 0.0, %v613
        %v615 = vrot.slane %v608, 4
        %v616 = vsel %vm505, 0.0, %v615
        %v617 = vsel %vm505, %v555, %v536
        %v619 = vunpack.c.l.s4 1983009808
        %v620 = vunpack.c.0.s8 %v619
        %v621 = vperm.slane %v617, %v620
        %v622 = vrot.slane %v556, 4
        %v623 = vsel %vm505, %v622, %v554
        %v625 = vunpack.c.l.s4 1983009808
        %v626 = vunpack.c.0.s8 %v625
        %v627 = vperm.slane %v623, %v626
        %v628 = vsel %vm505, %v559, %v548
        %v630 = vunpack.c.l.s4 1983009808
        %v631 = vunpack.c.0.s8 %v630
        %v632 = vperm.slane %v628, %v631
        %v633 = vrot.slane %v560, 4
        %v634 = vsel %vm505, %v633, %v558
        %v636 = vunpack.c.l.s4 1983009808
        %v637 = vunpack.c.0.s8 %v636
        %v638 = vperm.slane %v634, %v637
        %v639 = vrot.slane %v627, 4
        %v640 = vsel %vm505, %v639, %v621
        %v641 = vrot.slane %v621, 4
        %v642 = vsel %vm505, %v627, %v641
        %v644 = vunpack.c.l.s4 1934713408
        %v645 = vunpack.c.0.s8 %v644
        %v646 = vperm.slane %v640, %v645
        %v648 = vunpack.c.l.s4 1934713408
        %v649 = vunpack.c.0.s8 %v648
        %v650 = vperm.slane %v642, %v649
        %v651 = vrot.slane %v638, 4
        %v652 = vsel %vm505, %v651, %v632
        %v653 = vrot.slane %v632, 4
        %v654 = vsel %vm505, %v638, %v653
        %v656 = vunpack.c.l.s4 1934713408
        %v657 = vunpack.c.0.s8 %v656
        %v658 = vperm.slane %v652, %v657
        %v660 = vunpack.c.l.s4 1934713408
        %v661 = vunpack.c.0.s8 %v660
        %v662 = vperm.slane %v654, %v661
        %v663 = vrot.slane %v658, 4
        %v664 = vsel %vm505, %v663, %v646
        %v665 = vrot.slane %v646, 4
        %v666 = vsel %vm505, %v658, %v665
        %v667 = vrot.slane %v662, 4
        %v668 = vsel %vm505, %v667, %v650
        %v669 = vrot.slane %v650, 4
        %v670 = vsel %vm505, %v662, %v669
        %v671 = vsel %vm505, %v611, %v592
        %v673 = vunpack.c.l.s4 1983009808
        %v674 = vunpack.c.0.s8 %v673
        %v675 = vperm.slane %v671, %v674
        %v676 = vrot.slane %v612, 4
        %v677 = vsel %vm505, %v676, %v610
        %v679 = vunpack.c.l.s4 1983009808
        %v680 = vunpack.c.0.s8 %v679
        %v681 = vperm.slane %v677, %v680
        %v682 = vsel %vm505, %v615, %v604
        %v684 = vunpack.c.l.s4 1983009808
        %v685 = vunpack.c.0.s8 %v684
        %v686 = vperm.slane %v682, %v685
        %v687 = vrot.slane %v616, 4
        %v688 = vsel %vm505, %v687, %v614
        %v690 = vunpack.c.l.s4 1983009808
        %v691 = vunpack.c.0.s8 %v690
        %v692 = vperm.slane %v688, %v691
        %v693 = vrot.slane %v681, 4
        %v694 = vsel %vm505, %v693, %v675
        %v695 = vrot.slane %v675, 4
        %v696 = vsel %vm505, %v681, %v695
        %v698 = vunpack.c.l.s4 1934713408
        %v699 = vunpack.c.0.s8 %v698
        %v700 = vperm.slane %v694, %v699
        %v702 = vunpack.c.l.s4 1934713408
        %v703 = vunpack.c.0.s8 %v702
        %v704 = vperm.slane %v696, %v703
        %v705 = vrot.slane %v692, 4
        %v706 = vsel %vm505, %v705, %v686
        %v707 = vrot.slane %v686, 4
        %v708 = vsel %vm505, %v692, %v707
        %v710 = vunpack.c.l.s4 1934713408
        %v711 = vunpack.c.0.s8 %v710
        %v712 = vperm.slane %v706, %v711
        %v714 = vunpack.c.l.s4 1934713408
        %v715 = vunpack.c.0.s8 %v714
        %v716 = vperm.slane %v708, %v715
        %v717 = vrot.slane %v712, 4
        %v718 = vsel %vm505, %v717, %v700
        %v719 = vrot.slane %v700, 4
        %v720 = vsel %vm505, %v712, %v719
        %v721 = vrot.slane %v716, 4
        %v722 = vsel %vm505, %v721, %v704
        %v723 = vrot.slane %v704, 4
        %v724 = vsel %vm505, %v716, %v723
        %v725 = vpack.c.bf16 %v664, %v664
        %v726 = vpack.c.bf16 %v666, %v666
        %v727 = vpack.c.bf16 %v668, %v668
        %v728 = vpack.c.bf16 %v670, %v670
        %v729 = vpack.c.bf16 %v718, %v718
        %v730 = vpack.c.bf16 %v720, %v720
        %v731 = vpack.c.bf16 %v722, %v722
        %v732 = vpack.c.bf16 %v724, %v724
        %733 = vrot.lane.b32.xlu0 %v480, 96
        %v734 = vpop.permute.xlu0 %733
        %735 = vrot.lane.b32.xlu0 %v482, 96
        %v736 = vpop.permute.xlu0 %735
        %737 = vrot.lane.b32.xlu0 %v487, 96
        %v738 = vpop.permute.xlu0 %737
        %739 = vrot.lane.b32.xlu0 %v489, 96
        %v740 = vpop.permute.xlu0 %739
        %741 = vrot.lane.b32.xlu0 %v493, 96
        %v742 = vpop.permute.xlu0 %741
        %743 = vrot.lane.b32.xlu0 %v495, 96
        %v744 = vpop.permute.xlu0 %743
        %745 = vrot.lane.b32.xlu0 %v499, 96
        %v746 = vpop.permute.xlu0 %745
        %747 = vrot.lane.b32.xlu0 %v501, 96
        %v748 = vpop.permute.xlu0 %747
        %v757 = vrot.slane %v742, 4
        %v758 = vsel %vm505, %v757, %v734
        %v759 = vrot.slane %v734, 4
        %v760 = vsel %vm505, %v742, %v759
        %v762 = vunpack.c.l.s4 1983009808
        %v763 = vunpack.c.0.s8 %v762
        %v764 = vperm.slane %v758, %v763
        %v766 = vunpack.c.l.s4 1983009808
        %v767 = vunpack.c.0.s8 %v766
        %v768 = vperm.slane %v760, %v767
        %v769 = vrot.slane %v746, 4
        %v770 = vsel %vm505, %v769, %v738
        %v771 = vrot.slane %v738, 4
        %v772 = vsel %vm505, %v746, %v771
        %v774 = vunpack.c.l.s4 1983009808
        %v775 = vunpack.c.0.s8 %v774
        %v776 = vperm.slane %v770, %v775
        %v778 = vunpack.c.l.s4 1983009808
        %v779 = vunpack.c.0.s8 %v778
        %v780 = vperm.slane %v772, %v779
        %v781 = vrot.slane %v776, 4
        %v782 = vsel %vm505, %v781, %v764
        %v783 = vrot.slane %v764, 4
        %v784 = vsel %vm505, %v776, %v783
        %v786 = vunpack.c.l.s4 1934713408
        %v787 = vunpack.c.0.s8 %v786
        %v788 = vperm.slane %v782, %v787
        %v790 = vunpack.c.l.s4 1934713408
        %v791 = vunpack.c.0.s8 %v790
        %v792 = vperm.slane %v784, %v791
        %v793 = vrot.slane %v780, 4
        %v794 = vsel %vm505, %v793, %v768
        %v795 = vrot.slane %v768, 4
        %v796 = vsel %vm505, %v780, %v795
        %v798 = vunpack.c.l.s4 1934713408
        %v799 = vunpack.c.0.s8 %v798
        %v800 = vperm.slane %v794, %v799
        %v802 = vunpack.c.l.s4 1934713408
        %v803 = vunpack.c.0.s8 %v802
        %v804 = vperm.slane %v796, %v803
        %v805 = vrot.slane %v788, 4
        %v806 = vsel %vm505, 0.0, %v805
        %v807 = vrot.slane %v792, 4
        %v808 = vsel %vm505, 0.0, %v807
        %v809 = vrot.slane %v800, 4
        %v810 = vsel %vm505, 0.0, %v809
        %v811 = vrot.slane %v804, 4
        %v812 = vsel %vm505, 0.0, %v811
        %v813 = vrot.slane %v744, 4
        %v814 = vsel %vm505, %v813, %v736
        %v815 = vrot.slane %v736, 4
        %v816 = vsel %vm505, %v744, %v815
        %v818 = vunpack.c.l.s4 1983009808
        %v819 = vunpack.c.0.s8 %v818
        %v820 = vperm.slane %v814, %v819
        %v822 = vunpack.c.l.s4 1983009808
        %v823 = vunpack.c.0.s8 %v822
        %v824 = vperm.slane %v816, %v823
        %v825 = vrot.slane %v748, 4
        %v826 = vsel %vm505, %v825, %v740
        %v827 = vrot.slane %v740, 4
        %v828 = vsel %vm505, %v748, %v827
        %v830 = vunpack.c.l.s4 1983009808
        %v831 = vunpack.c.0.s8 %v830
        %v832 = vperm.slane %v826, %v831
        %v834 = vunpack.c.l.s4 1983009808
        %v835 = vunpack.c.0.s8 %v834
        %v836 = vperm.slane %v828, %v835
        %v837 = vrot.slane %v832, 4
        %v838 = vsel %vm505, %v837, %v820
        %v839 = vrot.slane %v820, 4
        %v840 = vsel %vm505, %v832, %v839
        %v842 = vunpack.c.l.s4 1934713408
        %v843 = vunpack.c.0.s8 %v842
        %v844 = vperm.slane %v838, %v843
        %v846 = vunpack.c.l.s4 1934713408
        %v847 = vunpack.c.0.s8 %v846
        %v848 = vperm.slane %v840, %v847
        %v849 = vrot.slane %v836, 4
        %v850 = vsel %vm505, %v849, %v824
        %v851 = vrot.slane %v824, 4
        %v852 = vsel %vm505, %v836, %v851
        %v854 = vunpack.c.l.s4 1934713408
        %v855 = vunpack.c.0.s8 %v854
        %v856 = vperm.slane %v850, %v855
        %v858 = vunpack.c.l.s4 1934713408
        %v859 = vunpack.c.0.s8 %v858
        %v860 = vperm.slane %v852, %v859
        %v861 = vrot.slane %v844, 4
        %v862 = vsel %vm505, 0.0, %v861
        %v863 = vrot.slane %v848, 4
        %v864 = vsel %vm505, 0.0, %v863
        %v865 = vrot.slane %v856, 4
        %v866 = vsel %vm505, 0.0, %v865
        %v867 = vrot.slane %v860, 4
        %v868 = vsel %vm505, 0.0, %v867
        %v869 = vsel %vm505, %v807, %v788
        %v871 = vunpack.c.l.s4 1983009808
        %v872 = vunpack.c.0.s8 %v871
        %v873 = vperm.slane %v869, %v872
        %v874 = vrot.slane %v808, 4
        %v875 = vsel %vm505, %v874, %v806
        %v877 = vunpack.c.l.s4 1983009808
        %v878 = vunpack.c.0.s8 %v877
        %v879 = vperm.slane %v875, %v878
        %v880 = vsel %vm505, %v811, %v800
        %v882 = vunpack.c.l.s4 1983009808
        %v883 = vunpack.c.0.s8 %v882
        %v884 = vperm.slane %v880, %v883
        %v885 = vrot.slane %v812, 4
        %v886 = vsel %vm505, %v885, %v810
        %v888 = vunpack.c.l.s4 1983009808
        %v889 = vunpack.c.0.s8 %v888
        %v890 = vperm.slane %v886, %v889
        %v891 = vrot.slane %v879, 4
        %v892 = vsel %vm505, %v891, %v873
        %v893 = vrot.slane %v873, 4
        %v894 = vsel %vm505, %v879, %v893
        %v896 = vunpack.c.l.s4 1934713408
        %v897 = vunpack.c.0.s8 %v896
        %v898 = vperm.slane %v892, %v897
        %v900 = vunpack.c.l.s4 1934713408
        %v901 = vunpack.c.0.s8 %v900
        %v902 = vperm.slane %v894, %v901
        %v903 = vrot.slane %v890, 4
        %v904 = vsel %vm505, %v903, %v884
        %v905 = vrot.slane %v884, 4
        %v906 = vsel %vm505, %v890, %v905
        %v908 = vunpack.c.l.s4 1934713408
        %v909 = vunpack.c.0.s8 %v908
        %v910 = vperm.slane %v904, %v909
        %v912 = vunpack.c.l.s4 1934713408
        %v913 = vunpack.c.0.s8 %v912
        %v914 = vperm.slane %v906, %v913
        %v915 = vrot.slane %v910, 4
        %v916 = vsel %vm505, %v915, %v898
        %v917 = vrot.slane %v898, 4
        %v918 = vsel %vm505, %v910, %v917
        %v919 = vrot.slane %v914, 4
        %v920 = vsel %vm505, %v919, %v902
        %v921 = vrot.slane %v902, 4
        %v922 = vsel %vm505, %v914, %v921
        %v923 = vsel %vm505, %v863, %v844
        %v925 = vunpack.c.l.s4 1983009808
        %v926 = vunpack.c.0.s8 %v925
        %v927 = vperm.slane %v923, %v926
        %v928 = vrot.slane %v864, 4
        %v929 = vsel %vm505, %v928, %v862
        %v931 = vunpack.c.l.s4 1983009808
        %v932 = vunpack.c.0.s8 %v931
        %v933 = vperm.slane %v929, %v932
        %v934 = vsel %vm505, %v867, %v856
        %v936 = vunpack.c.l.s4 1983009808
        %v937 = vunpack.c.0.s8 %v936
        %v938 = vperm.slane %v934, %v937
        %v939 = vrot.slane %v868, 4
        %v940 = vsel %vm505, %v939, %v866
        %v942 = vunpack.c.l.s4 1983009808
        %v943 = vunpack.c.0.s8 %v942
        %v944 = vperm.slane %v940, %v943
        %v945 = vrot.slane %v933, 4
        %v946 = vsel %vm505, %v945, %v927
        %v947 = vrot.slane %v927, 4
        %v948 = vsel %vm505, %v933, %v947
        %v950 = vunpack.c.l.s4 1934713408
        %v951 = vunpack.c.0.s8 %v950
        %v952 = vperm.slane %v946, %v951
        %v954 = vunpack.c.l.s4 1934713408
        %v955 = vunpack.c.0.s8 %v954
        %v956 = vperm.slane %v948, %v955
        %v957 = vrot.slane %v944, 4
        %v958 = vsel %vm505, %v957, %v938
        %v959 = vrot.slane %v938, 4
        %v960 = vsel %vm505, %v944, %v959
        %v962 = vunpack.c.l.s4 1934713408
        %v963 = vunpack.c.0.s8 %v962
        %v964 = vperm.slane %v958, %v963
        %v966 = vunpack.c.l.s4 1934713408
        %v967 = vunpack.c.0.s8 %v966
        %v968 = vperm.slane %v960, %v967
        %v969 = vrot.slane %v964, 4
        %v970 = vsel %vm505, %v969, %v952
        %v971 = vrot.slane %v952, 4
        %v972 = vsel %vm505, %v964, %v971
        %v973 = vrot.slane %v968, 4
        %v974 = vsel %vm505, %v973, %v956
        %v975 = vrot.slane %v956, 4
        %v976 = vsel %vm505, %v968, %v975
        %v977 = vpack.c.bf16 %v916, %v916
        %v978 = vpack.c.bf16 %v918, %v918
        %v979 = vpack.c.bf16 %v920, %v920
        %v980 = vpack.c.bf16 %v922, %v922
        %v981 = vpack.c.bf16 %v970, %v970
        %v982 = vpack.c.bf16 %v972, %v972
        %v983 = vpack.c.bf16 %v974, %v974
        %v984 = vpack.c.bf16 %v976, %v976
        %985 = vrot.lane.b32.xlu0 %v480, 64
        %v986 = vpop.permute.xlu0 %985
        %987 = vrot.lane.b32.xlu0 %v482, 64
        %v988 = vpop.permute.xlu0 %987
        %989 = vrot.lane.b32.xlu0 %v487, 64
        %v990 = vpop.permute.xlu0 %989
        %991 = vrot.lane.b32.xlu0 %v489, 64
        %v992 = vpop.permute.xlu0 %991
        %993 = vrot.lane.b32.xlu0 %v493, 64
        %v994 = vpop.permute.xlu0 %993
        %995 = vrot.lane.b32.xlu0 %v495, 64
        %v996 = vpop.permute.xlu0 %995
        %997 = vrot.lane.b32.xlu0 %v499, 64
        %v998 = vpop.permute.xlu0 %997
        %999 = vrot.lane.b32.xlu0 %v501, 64
        %v1000 = vpop.permute.xlu0 %999
        %v1009 = vrot.slane %v994, 4
        %v1010 = vsel %vm505, %v1009, %v986
        %v1011 = vrot.slane %v986, 4
        %v1012 = vsel %vm505, %v994, %v1011
        %v1014 = vunpack.c.l.s4 1983009808
        %v1015 = vunpack.c.0.s8 %v1014
        %v1016 = vperm.slane %v1010, %v1015
        %v1018 = vunpack.c.l.s4 1983009808
        %v1019 = vunpack.c.0.s8 %v1018
        %v1020 = vperm.slane %v1012, %v1019
        %v1021 = vrot.slane %v998, 4
        %v1022 = vsel %vm505, %v1021, %v990
        %v1023 = vrot.slane %v990, 4
        %v1024 = vsel %vm505, %v998, %v1023
        %v1026 = vunpack.c.l.s4 1983009808
        %v1027 = vunpack.c.0.s8 %v1026
        %v1028 = vperm.slane %v1022, %v1027
        %v1030 = vunpack.c.l.s4 1983009808
        %v1031 = vunpack.c.0.s8 %v1030
        %v1032 = vperm.slane %v1024, %v1031
        %v1033 = vrot.slane %v1028, 4
        %v1034 = vsel %vm505, %v1033, %v1016
        %v1035 = vrot.slane %v1016, 4
        %v1036 = vsel %vm505, %v1028, %v1035
        %v1038 = vunpack.c.l.s4 1934713408
        %v1039 = vunpack.c.0.s8 %v1038
        %v1040 = vperm.slane %v1034, %v1039
        %v1042 = vunpack.c.l.s4 1934713408
        %v1043 = vunpack.c.0.s8 %v1042
        %v1044 = vperm.slane %v1036, %v1043
        %v1045 = vrot.slane %v1032, 4
        %v1046 = vsel %vm505, %v1045, %v1020
        %v1047 = vrot.slane %v1020, 4
        %v1048 = vsel %vm505, %v1032, %v1047
        %v1050 = vunpack.c.l.s4 1934713408
        %v1051 = vunpack.c.0.s8 %v1050
        %v1052 = vperm.slane %v1046, %v1051
        %v1054 = vunpack.c.l.s4 1934713408
        %v1055 = vunpack.c.0.s8 %v1054
        %v1056 = vperm.slane %v1048, %v1055
        %v1057 = vrot.slane %v1040, 4
        %v1058 = vsel %vm505, 0.0, %v1057
        %v1059 = vrot.slane %v1044, 4
        %v1060 = vsel %vm505, 0.0, %v1059
        %v1061 = vrot.slane %v1052, 4
        %v1062 = vsel %vm505, 0.0, %v1061
        %v1063 = vrot.slane %v1056, 4
        %v1064 = vsel %vm505, 0.0, %v1063
        %v1065 = vrot.slane %v996, 4
        %v1066 = vsel %vm505, %v1065, %v988
        %v1067 = vrot.slane %v988, 4
        %v1068 = vsel %vm505, %v996, %v1067
        %v1070 = vunpack.c.l.s4 1983009808
        %v1071 = vunpack.c.0.s8 %v1070
        %v1072 = vperm.slane %v1066, %v1071
        %v1074 = vunpack.c.l.s4 1983009808
        %v1075 = vunpack.c.0.s8 %v1074
        %v1076 = vperm.slane %v1068, %v1075
        %v1077 = vrot.slane %v1000, 4
        %v1078 = vsel %vm505, %v1077, %v992
        %v1079 = vrot.slane %v992, 4
        %v1080 = vsel %vm505, %v1000, %v1079
        %v1082 = vunpack.c.l.s4 1983009808
        %v1083 = vunpack.c.0.s8 %v1082
        %v1084 = vperm.slane %v1078, %v1083
        %v1086 = vunpack.c.l.s4 1983009808
        %v1087 = vunpack.c.0.s8 %v1086
        %v1088 = vperm.slane %v1080, %v1087
        %v1089 = vrot.slane %v1084, 4
        %v1090 = vsel %vm505, %v1089, %v1072
        %v1091 = vrot.slane %v1072, 4
        %v1092 = vsel %vm505, %v1084, %v1091
        %v1094 = vunpack.c.l.s4 1934713408
        %v1095 = vunpack.c.0.s8 %v1094
        %v1096 = vperm.slane %v1090, %v1095
        %v1098 = vunpack.c.l.s4 1934713408
        %v1099 = vunpack.c.0.s8 %v1098
        %v1100 = vperm.slane %v1092, %v1099
        %v1101 = vrot.slane %v1088, 4
        %v1102 = vsel %vm505, %v1101, %v1076
        %v1103 = vrot.slane %v1076, 4
        %v1104 = vsel %vm505, %v1088, %v1103
        %v1106 = vunpack.c.l.s4 1934713408
        %v1107 = vunpack.c.0.s8 %v1106
        %v1108 = vperm.slane %v1102, %v1107
        %v1110 = vunpack.c.l.s4 1934713408
        %v1111 = vunpack.c.0.s8 %v1110
        %v1112 = vperm.slane %v1104, %v1111
        %v1113 = vrot.slane %v1096, 4
        %v1114 = vsel %vm505, 0.0, %v1113
        %v1115 = vrot.slane %v1100, 4
        %v1116 = vsel %vm505, 0.0, %v1115
        %v1117 = vrot.slane %v1108, 4
        %v1118 = vsel %vm505, 0.0, %v1117
        %v1119 = vrot.slane %v1112, 4
        %v1120 = vsel %vm505, 0.0, %v1119
        %v1121 = vsel %vm505, %v1059, %v1040
        %v1123 = vunpack.c.l.s4 1983009808
        %v1124 = vunpack.c.0.s8 %v1123
        %v1125 = vperm.slane %v1121, %v1124
        %v1126 = vrot.slane %v1060, 4
        %v1127 = vsel %vm505, %v1126, %v1058
        %v1129 = vunpack.c.l.s4 1983009808
        %v1130 = vunpack.c.0.s8 %v1129
        %v1131 = vperm.slane %v1127, %v1130
        %v1132 = vsel %vm505, %v1063, %v1052
        %v1134 = vunpack.c.l.s4 1983009808
        %v1135 = vunpack.c.0.s8 %v1134
        %v1136 = vperm.slane %v1132, %v1135
        %v1137 = vrot.slane %v1064, 4
        %v1138 = vsel %vm505, %v1137, %v1062
        %v1140 = vunpack.c.l.s4 1983009808
        %v1141 = vunpack.c.0.s8 %v1140
        %v1142 = vperm.slane %v1138, %v1141
        %v1143 = vrot.slane %v1131, 4
        %v1144 = vsel %vm505, %v1143, %v1125
        %v1145 = vrot.slane %v1125, 4
        %v1146 = vsel %vm505, %v1131, %v1145
        %v1148 = vunpack.c.l.s4 1934713408
        %v1149 = vunpack.c.0.s8 %v1148
        %v1150 = vperm.slane %v1144, %v1149
        %v1152 = vunpack.c.l.s4 1934713408
        %v1153 = vunpack.c.0.s8 %v1152
        %v1154 = vperm.slane %v1146, %v1153
        %v1155 = vrot.slane %v1142, 4
        %v1156 = vsel %vm505, %v1155, %v1136
        %v1157 = vrot.slane %v1136, 4
        %v1158 = vsel %vm505, %v1142, %v1157
        %v1160 = vunpack.c.l.s4 1934713408
        %v1161 = vunpack.c.0.s8 %v1160
        %v1162 = vperm.slane %v1156, %v1161
        %v1164 = vunpack.c.l.s4 1934713408
        %v1165 = vunpack.c.0.s8 %v1164
        %v1166 = vperm.slane %v1158, %v1165
        %v1167 = vrot.slane %v1162, 4
        %v1168 = vsel %vm505, %v1167, %v1150
        %v1169 = vrot.slane %v1150, 4
        %v1170 = vsel %vm505, %v1162, %v1169
        %v1171 = vrot.slane %v1166, 4
        %v1172 = vsel %vm505, %v1171, %v1154
        %v1173 = vrot.slane %v1154, 4
        %v1174 = vsel %vm505, %v1166, %v1173
        %v1175 = vsel %vm505, %v1115, %v1096
        %v1177 = vunpack.c.l.s4 1983009808
        %v1178 = vunpack.c.0.s8 %v1177
        %v1179 = vperm.slane %v1175, %v1178
        %v1180 = vrot.slane %v1116, 4
        %v1181 = vsel %vm505, %v1180, %v1114
        %v1183 = vunpack.c.l.s4 1983009808
        %v1184 = vunpack.c.0.s8 %v1183
        %v1185 = vperm.slane %v1181, %v1184
        %v1186 = vsel %vm505, %v1119, %v1108
        %v1188 = vunpack.c.l.s4 1983009808
        %v1189 = vunpack.c.0.s8 %v1188
        %v1190 = vperm.slane %v1186, %v1189
        %v1191 = vrot.slane %v1120, 4
        %v1192 = vsel %vm505, %v1191, %v1118
        %v1194 = vunpack.c.l.s4 1983009808
        %v1195 = vunpack.c.0.s8 %v1194
        %v1196 = vperm.slane %v1192, %v1195
        %v1197 = vrot.slane %v1185, 4
        %v1198 = vsel %vm505, %v1197, %v1179
        %v1199 = vrot.slane %v1179, 4
        %v1200 = vsel %vm505, %v1185, %v1199
        %v1202 = vunpack.c.l.s4 1934713408
        %v1203 = vunpack.c.0.s8 %v1202
        %v1204 = vperm.slane %v1198, %v1203
        %v1206 = vunpack.c.l.s4 1934713408
        %v1207 = vunpack.c.0.s8 %v1206
        %v1208 = vperm.slane %v1200, %v1207
        %v1209 = vrot.slane %v1196, 4
        %v1210 = vsel %vm505, %v1209, %v1190
        %v1211 = vrot.slane %v1190, 4
        %v1212 = vsel %vm505, %v1196, %v1211
        %v1214 = vunpack.c.l.s4 1934713408
        %v1215 = vunpack.c.0.s8 %v1214
        %v1216 = vperm.slane %v1210, %v1215
        %v1218 = vunpack.c.l.s4 1934713408
        %v1219 = vunpack.c.0.s8 %v1218
        %v1220 = vperm.slane %v1212, %v1219
        %v1221 = vrot.slane %v1216, 4
        %v1222 = vsel %vm505, %v1221, %v1204
        %v1223 = vrot.slane %v1204, 4
        %v1224 = vsel %vm505, %v1216, %v1223
        %v1225 = vrot.slane %v1220, 4
        %v1226 = vsel %vm505, %v1225, %v1208
        %v1227 = vrot.slane %v1208, 4
        %v1228 = vsel %vm505, %v1220, %v1227
        %v1229 = vpack.c.bf16 %v1168, %v1168
        %v1230 = vpack.c.bf16 %v1170, %v1170
        %v1231 = vpack.c.bf16 %v1172, %v1172
        %v1232 = vpack.c.bf16 %v1174, %v1174
        %v1233 = vpack.c.bf16 %v1222, %v1222
        %v1234 = vpack.c.bf16 %v1224, %v1224
        %v1235 = vpack.c.bf16 %v1226, %v1226
        %v1236 = vpack.c.bf16 %v1228, %v1228
        %vm1237 = vcmask 64512
        %v1239 = vsel %vm1237, %v725, 0
        %v1242 = vsel %vm1237, %v977, 0
        %1244 = vmatpush.bf16.xpose.msra.mxu0 0
        %1245 = vmatpush.bf16.xpose.msra.mxu0 0
        %1246 = vmatpush.bf16.xpose.msra.mxu0 0
        %1247 = vmatpush.bf16.xpose.msra.mxu0 0
        %1248 = vmatpush.bf16.xpose.msra.mxu0 0
        %1249 = vmatpush.bf16.xpose.msra.mxu0 0
        %1250 = vmatpush.bf16.xpose.msra.mxu0 0
        %1251 = vmatpush.bf16.xpose.msra.mxu0 %v1242
        %1252 = vmatmul.bf16.gmra.mxu0 %v1239
        %v1253 = vpop.f32.mrf.mxu0
        %v1254 = vadd.f32 0.0, %v1253
        %v1255 = vpop.f32.mrf.mxu0
        %1256 = vdwg.mxu0
        %v1258 = vsel %vm1237, %v726, 0
        %v1261 = vsel %vm1237, %v978, 0
        %1263 = vmatpush.bf16.xpose.msra.mxu0 0
        %1264 = vmatpush.bf16.xpose.msra.mxu0 0
        %1265 = vmatpush.bf16.xpose.msra.mxu0 0
        %1266 = vmatpush.bf16.xpose.msra.mxu0 0
        %1267 = vmatpush.bf16.xpose.msra.mxu0 0
        %1268 = vmatpush.bf16.xpose.msra.mxu0 0
        %1269 = vmatpush.bf16.xpose.msra.mxu0 0
        %1270 = vmatpush.bf16.xpose.msra.mxu0 %v1261
        %1271 = vmatmul.bf16.gmra.mxu0 %v1258
        %v1272 = vpop.f32.mrf.mxu0
        %v1273 = vadd.f32 0.0, %v1272
        %v1274 = vpop.f32.mrf.mxu0
        %1275 = vdwg.mxu0
        %v1277 = vsel %vm1237, %v727, 0
        %v1280 = vsel %vm1237, %v979, 0
        %1282 = vmatpush.bf16.xpose.msra.mxu0 0
        %1283 = vmatpush.bf16.xpose.msra.mxu0 0
        %1284 = vmatpush.bf16.xpose.msra.mxu0 0
        %1285 = vmatpush.bf16.xpose.msra.mxu0 0
        %1286 = vmatpush.bf16.xpose.msra.mxu0 0
        %1287 = vmatpush.bf16.xpose.msra.mxu0 0
        %1288 = vmatpush.bf16.xpose.msra.mxu0 0
        %1289 = vmatpush.bf16.xpose.msra.mxu0 %v1280
        %1290 = vmatmul.bf16.gmra.mxu0 %v1277
        %v1291 = vpop.f32.mrf.mxu0
        %v1292 = vadd.f32 0.0, %v1291
        %v1293 = vpop.f32.mrf.mxu0
        %1294 = vdwg.mxu0
        %v1296 = vsel %vm1237, %v728, 0
        %v1299 = vsel %vm1237, %v980, 0
        %1301 = vmatpush.bf16.xpose.msra.mxu0 0
        %1302 = vmatpush.bf16.xpose.msra.mxu0 0
        %1303 = vmatpush.bf16.xpose.msra.mxu0 0
        %1304 = vmatpush.bf16.xpose.msra.mxu0 0
        %1305 = vmatpush.bf16.xpose.msra.mxu0 0
        %1306 = vmatpush.bf16.xpose.msra.mxu0 0
        %1307 = vmatpush.bf16.xpose.msra.mxu0 0
        %1308 = vmatpush.bf16.xpose.msra.mxu0 %v1299
        %1309 = vmatmul.bf16.gmra.mxu0 %v1296
        %v1310 = vpop.f32.mrf.mxu0
        %v1311 = vadd.f32 0.0, %v1310
        %v1312 = vpop.f32.mrf.mxu0
        %1313 = vdwg.mxu0
        %v1315 = vsel %vm1237, %v729, 0
        %v1318 = vsel %vm1237, %v981, 0
        %1320 = vmatpush.bf16.xpose.msra.mxu0 0
        %1321 = vmatpush.bf16.xpose.msra.mxu0 0
        %1322 = vmatpush.bf16.xpose.msra.mxu0 0
        %1323 = vmatpush.bf16.xpose.msra.mxu0 0
        %1324 = vmatpush.bf16.xpose.msra.mxu0 0
        %1325 = vmatpush.bf16.xpose.msra.mxu0 0
        %1326 = vmatpush.bf16.xpose.msra.mxu0 0
        %1327 = vmatpush.bf16.xpose.msra.mxu0 %v1318
        %1328 = vmatmul.bf16.gmra.mxu0 %v1315
        %v1329 = vpop.f32.mrf.mxu0
        %v1330 = vadd.f32 0.0, %v1329
        %v1331 = vpop.f32.mrf.mxu0
        %1332 = vdwg.mxu0
        %v1334 = vsel %vm1237, %v730, 0
        %v1337 = vsel %vm1237, %v982, 0
        %1339 = vmatpush.bf16.xpose.msra.mxu0 0
        %1340 = vmatpush.bf16.xpose.msra.mxu0 0
        %1341 = vmatpush.bf16.xpose.msra.mxu0 0
        %1342 = vmatpush.bf16.xpose.msra.mxu0 0
        %1343 = vmatpush.bf16.xpose.msra.mxu0 0
        %1344 = vmatpush.bf16.xpose.msra.mxu0 0
        %1345 = vmatpush.bf16.xpose.msra.mxu0 0
        %1346 = vmatpush.bf16.xpose.msra.mxu0 %v1337
        %1347 = vmatmul.bf16.gmra.mxu0 %v1334
        %v1348 = vpop.f32.mrf.mxu0
        %v1349 = vadd.f32 0.0, %v1348
        %v1350 = vpop.f32.mrf.mxu0
        %1351 = vdwg.mxu0
        %v1353 = vsel %vm1237, %v731, 0
        %v1356 = vsel %vm1237, %v983, 0
        %1358 = vmatpush.bf16.xpose.msra.mxu0 0
        %1359 = vmatpush.bf16.xpose.msra.mxu0 0
        %1360 = vmatpush.bf16.xpose.msra.mxu0 0
        %1361 = vmatpush.bf16.xpose.msra.mxu0 0
        %1362 = vmatpush.bf16.xpose.msra.mxu0 0
        %1363 = vmatpush.bf16.xpose.msra.mxu0 0
        %1364 = vmatpush.bf16.xpose.msra.mxu0 0
        %1365 = vmatpush.bf16.xpose.msra.mxu0 %v1356
        %1366 = vmatmul.bf16.gmra.mxu0 %v1353
        %v1367 = vpop.f32.mrf.mxu0
        %v1368 = vadd.f32 0.0, %v1367
        %v1369 = vpop.f32.mrf.mxu0
        %1370 = vdwg.mxu0
        %v1372 = vsel %vm1237, %v732, 0
        %v1375 = vsel %vm1237, %v984, 0
        %1377 = vmatpush.bf16.xpose.msra.mxu0 0
        %1378 = vmatpush.bf16.xpose.msra.mxu0 0
        %1379 = vmatpush.bf16.xpose.msra.mxu0 0
        %1380 = vmatpush.bf16.xpose.msra.mxu0 0
        %1381 = vmatpush.bf16.xpose.msra.mxu0 0
        %1382 = vmatpush.bf16.xpose.msra.mxu0 0
        %1383 = vmatpush.bf16.xpose.msra.mxu0 0
        %1384 = vmatpush.bf16.xpose.msra.mxu0 %v1375
        %1385 = vmatmul.bf16.gmra.mxu0 %v1372
        %v1386 = vpop.f32.mrf.mxu0
        %v1387 = vadd.f32 0.0, %v1386
        %v1388 = vpop.f32.mrf.mxu0
        %1389 = vdwg.mxu0
        %v1390 = vld [vmem:[#allocation6] sm:$0x1]
        %v1391 = vld [vmem:[#allocation6 + $0x1] sm:$0x1]
        %v1394 = vperm.slane %v1390, 0
        %v1395 = vperm.slane %v1391, 0
        %v1398 = vadd.f32 %v1254, %v1394
        %v1399 = vadd.f32 %v1273, %v1394
        %v1400 = vadd.f32 %v1292, %v1394
        %v1401 = vadd.f32 %v1311, %v1394
        %v1402 = vadd.f32 %v1330, %v1395
        %v1403 = vadd.f32 %v1349, %v1395
        %v1404 = vadd.f32 %v1368, %v1395
        %v1405 = vadd.f32 %v1387, %v1395
        %v1406 = vsel %vm1237, %v1398, -inf
        %1407 = vmax.xlane.f32.xlu0 %v1406
        %v1408 = vpop.xlane.xlu0 %1407
        %v1409 = vsel %vm1237, %v1399, -inf
        %1410 = vmax.xlane.f32.xlu0 %v1409
        %v1411 = vpop.xlane.xlu0 %1410
        %v1412 = vsel %vm1237, %v1400, -inf
        %1413 = vmax.xlane.f32.xlu0 %v1412
        %v1414 = vpop.xlane.xlu0 %1413
        %v1415 = vsel %vm1237, %v1401, -inf
        %1416 = vmax.xlane.f32.xlu0 %v1415
        %v1417 = vpop.xlane.xlu0 %1416
        %v1418 = vsel %vm1237, %v1402, -inf
        %1419 = vmax.xlane.f32.xlu0 %v1418
        %v1420 = vpop.xlane.xlu0 %1419
        %v1421 = vsel %vm1237, %v1403, -inf
        %1422 = vmax.xlane.f32.xlu0 %v1421
        %v1423 = vpop.xlane.xlu0 %1422
        %v1424 = vsel %vm1237, %v1404, -inf
        %1425 = vmax.xlane.f32.xlu0 %v1424
        %v1426 = vpop.xlane.xlu0 %1425
        %v1427 = vsel %vm1237, %v1405, -inf
        %1428 = vmax.xlane.f32.xlu0 %v1427
        %v1429 = vpop.xlane.xlu0 %1428
        %v1430 = vsub.f32 %v1398, %v1408
        %v1431 = vsub.f32 %v1399, %v1411
        %v1432 = vsub.f32 %v1400, %v1414
        %v1433 = vsub.f32 %v1401, %v1417
        %v1434 = vsub.f32 %v1402, %v1420
        %v1435 = vsub.f32 %v1403, %v1423
        %v1436 = vsub.f32 %v1404, %v1426
        %v1437 = vsub.f32 %v1405, %v1429
        %v1438 = vmul.f32 %v1430, 1.442695
        %v1439 = vpow.pop %v1438
        %v1440 = vmul.f32 %v1431, 1.442695
        %v1441 = vpow.pop %v1440
        %v1442 = vmul.f32 %v1432, 1.442695
        %v1443 = vpow.pop %v1442
        %v1444 = vmul.f32 %v1433, 1.442695
        %v1445 = vpow.pop %v1444
        %v1446 = vmul.f32 %v1434, 1.442695
        %v1447 = vpow.pop %v1446
        %v1448 = vmul.f32 %v1435, 1.442695
        %v1449 = vpow.pop %v1448
        %v1450 = vmul.f32 %v1436, 1.442695
        %v1451 = vpow.pop %v1450
        %v1452 = vmul.f32 %v1437, 1.442695
        %v1453 = vpow.pop %v1452
        %v1454 = vsel %vm1237, %v1439, 0.0
        %1455 = vadd.xlane.f32.xlu0 %v1454
        %v1456 = vpop.xlane.xlu0 %1455
        %v1457 = vsel %vm1237, %v1441, 0.0
        %1458 = vadd.xlane.f32.xlu0 %v1457
        %v1459 = vpop.xlane.xlu0 %1458
        %v1460 = vsel %vm1237, %v1443, 0.0
        %1461 = vadd.xlane.f32.xlu0 %v1460
        %v1462 = vpop.xlane.xlu0 %1461
        %v1463 = vsel %vm1237, %v1445, 0.0
        %1464 = vadd.xlane.f32.xlu0 %v1463
        %v1465 = vpop.xlane.xlu0 %1464
        %v1466 = vsel %vm1237, %v1447, 0.0
        %1467 = vadd.xlane.f32.xlu0 %v1466
        %v1468 = vpop.xlane.xlu0 %1467
        %v1469 = vsel %vm1237, %v1449, 0.0
        %1470 = vadd.xlane.f32.xlu0 %v1469
        %v1471 = vpop.xlane.xlu0 %1470
        %v1472 = vsel %vm1237, %v1451, 0.0
        %1473 = vadd.xlane.f32.xlu0 %v1472
        %v1474 = vpop.xlane.xlu0 %1473
        %v1475 = vsel %vm1237, %v1453, 0.0
        %1476 = vadd.xlane.f32.xlu0 %v1475
        %v1477 = vpop.xlane.xlu0 %1476
        %v1478 = vrcp.pop %v1456
        %v1479 = vrcp.pop %v1459
        %v1480 = vrcp.pop %v1462
        %v1481 = vrcp.pop %v1465
        %v1482 = vrcp.pop %v1468
        %v1483 = vrcp.pop %v1471
        %v1484 = vrcp.pop %v1474
        %v1485 = vrcp.pop %v1477
        %v1486 = vmul.f32 %v1439, %v1478
        %v1487 = vmul.f32 %v1441, %v1479
        %v1488 = vmul.f32 %v1443, %v1480
        %v1489 = vmul.f32 %v1445, %v1481
        %v1490 = vmul.f32 %v1447, %v1482
        %v1491 = vmul.f32 %v1449, %v1483
        %v1492 = vmul.f32 %v1451, %v1484
        %v1493 = vmul.f32 %v1453, %v1485
        %v1494 = vpack.c.bf16 %v1486, %v1486
        %v1495 = vpack.c.bf16 %v1487, %v1487
        %v1496 = vpack.c.bf16 %v1488, %v1488
        %v1497 = vpack.c.bf16 %v1489, %v1489
        %v1498 = vpack.c.bf16 %v1490, %v1490
        %v1499 = vpack.c.bf16 %v1491, %v1491
        %v1500 = vpack.c.bf16 %v1492, %v1492
        %v1501 = vpack.c.bf16 %v1493, %v1493
        %v1503 = vsel %vm1237, %v1494, 0
        %vm1505 = vcmask 1043456
        %v1507 = vsel %vm1505, %v1229, 0
        %1509 = vmatpush.bf16.msra.mxu0 0
        %1510 = vmatpush.bf16.msra.mxu0 0
        %1511 = vmatpush.bf16.msra.mxu0 0
        %1512 = vmatpush.bf16.msra.mxu0 0
        %1513 = vmatpush.bf16.msra.mxu0 0
        %1514 = vmatpush.bf16.msra.mxu0 0
        %1515 = vmatpush.bf16.msra.mxu0 0
        %1516 = vmatpush.bf16.msra.mxu0 %v1507
        %1517 = vmatmul.bf16.gmra.mxu0 %v1503
        %v1518 = vpop.f32.mrf.mxu0
        %v1519 = vadd.f32 0.0, %v1518
        %v1520 = vpop.f32.mrf.mxu0
        %1521 = vdwg.mxu0
        %v1523 = vsel %vm1237, %v1495, 0
        %v1526 = vsel %vm1505, %v1230, 0
        %1528 = vmatpush.bf16.msra.mxu0 0
        %1529 = vmatpush.bf16.msra.mxu0 0
        %1530 = vmatpush.bf16.msra.mxu0 0
        %1531 = vmatpush.bf16.msra.mxu0 0
        %1532 = vmatpush.bf16.msra.mxu0 0
        %1533 = vmatpush.bf16.msra.mxu0 0
        %1534 = vmatpush.bf16.msra.mxu0 0
        %1535 = vmatpush.bf16.msra.mxu0 %v1526
        %1536 = vmatmul.bf16.gmra.mxu0 %v1523
        %v1537 = vpop.f32.mrf.mxu0
        %v1538 = vadd.f32 0.0, %v1537
        %v1539 = vpop.f32.mrf.mxu0
        %1540 = vdwg.mxu0
        %v1542 = vsel %vm1237, %v1496, 0
        %v1545 = vsel %vm1505, %v1231, 0
        %1547 = vmatpush.bf16.msra.mxu0 0
        %1548 = vmatpush.bf16.msra.mxu0 0
        %1549 = vmatpush.bf16.msra.mxu0 0
        %1550 = vmatpush.bf16.msra.mxu0 0
        %1551 = vmatpush.bf16.msra.mxu0 0
        %1552 = vmatpush.bf16.msra.mxu0 0
        %1553 = vmatpush.bf16.msra.mxu0 0
        %1554 = vmatpush.bf16.msra.mxu0 %v1545
        %1555 = vmatmul.bf16.gmra.mxu0 %v1542
        %v1556 = vpop.f32.mrf.mxu0
        %v1557 = vadd.f32 0.0, %v1556
        %v1558 = vpop.f32.mrf.mxu0
        %1559 = vdwg.mxu0
        %v1561 = vsel %vm1237, %v1497, 0
        %v1564 = vsel %vm1505, %v1232, 0
        %1566 = vmatpush.bf16.msra.mxu0 0
        %1567 = vmatpush.bf16.msra.mxu0 0
        %1568 = vmatpush.bf16.msra.mxu0 0
        %1569 = vmatpush.bf16.msra.mxu0 0
        %1570 = vmatpush.bf16.msra.mxu0 0
        %1571 = vmatpush.bf16.msra.mxu0 0
        %1572 = vmatpush.bf16.msra.mxu0 0
        %1573 = vmatpush.bf16.msra.mxu0 %v1564
        %1574 = vmatmul.bf16.gmra.mxu0 %v1561
        %v1575 = vpop.f32.mrf.mxu0
        %v1576 = vadd.f32 0.0, %v1575
        %v1577 = vpop.f32.mrf.mxu0
        %1578 = vdwg.mxu0
        %v1580 = vsel %vm1237, %v1498, 0
        %v1583 = vsel %vm1505, %v1233, 0
        %1585 = vmatpush.bf16.msra.mxu0 0
        %1586 = vmatpush.bf16.msra.mxu0 0
        %1587 = vmatpush.bf16.msra.mxu0 0
        %1588 = vmatpush.bf16.msra.mxu0 0
        %1589 = vmatpush.bf16.msra.mxu0 0
        %1590 = vmatpush.bf16.msra.mxu0 0
        %1591 = vmatpush.bf16.msra.mxu0 0
        %1592 = vmatpush.bf16.msra.mxu0 %v1583
        %1593 = vmatmul.bf16.gmra.mxu0 %v1580
        %v1594 = vpop.f32.mrf.mxu0
        %v1595 = vadd.f32 0.0, %v1594
        %v1596 = vpop.f32.mrf.mxu0
        %1597 = vdwg.mxu0
        %v1599 = vsel %vm1237, %v1499, 0
        %v1602 = vsel %vm1505, %v1234, 0
        %1604 = vmatpush.bf16.msra.mxu0 0
        %1605 = vmatpush.bf16.msra.mxu0 0
        %1606 = vmatpush.bf16.msra.mxu0 0
        %1607 = vmatpush.bf16.msra.mxu0 0
        %1608 = vmatpush.bf16.msra.mxu0 0
        %1609 = vmatpush.bf16.msra.mxu0 0
        %1610 = vmatpush.bf16.msra.mxu0 0
        %1611 = vmatpush.bf16.msra.mxu0 %v1602
        %1612 = vmatmul.bf16.gmra.mxu0 %v1599
        %v1613 = vpop.f32.mrf.mxu0
        %v1614 = vadd.f32 0.0, %v1613
        %v1615 = vpop.f32.mrf.mxu0
        %1616 = vdwg.mxu0
        %v1618 = vsel %vm1237, %v1500, 0
        %v1621 = vsel %vm1505, %v1235, 0
        %1623 = vmatpush.bf16.msra.mxu0 0
        %1624 = vmatpush.bf16.msra.mxu0 0
        %1625 = vmatpush.bf16.msra.mxu0 0
        %1626 = vmatpush.bf16.msra.mxu0 0
        %1627 = vmatpush.bf16.msra.mxu0 0
        %1628 = vmatpush.bf16.msra.mxu0 0
        %1629 = vmatpush.bf16.msra.mxu0 0
        %1630 = vmatpush.bf16.msra.mxu0 %v1621
        %1631 = vmatmul.bf16.gmra.mxu0 %v1618
        %v1632 = vpop.f32.mrf.mxu0
        %v1633 = vadd.f32 0.0, %v1632
        %v1634 = vpop.f32.mrf.mxu0
        %1635 = vdwg.mxu0
        %v1637 = vsel %vm1237, %v1501, 0
        %v1640 = vsel %vm1505, %v1236, 0
        %1642 = vmatpush.bf16.msra.mxu0 0
        %1643 = vmatpush.bf16.msra.mxu0 0
        %1644 = vmatpush.bf16.msra.mxu0 0
        %1645 = vmatpush.bf16.msra.mxu0 0
        %1646 = vmatpush.bf16.msra.mxu0 0
        %1647 = vmatpush.bf16.msra.mxu0 0
        %1648 = vmatpush.bf16.msra.mxu0 0
        %1649 = vmatpush.bf16.msra.mxu0 %v1640
        %1650 = vmatmul.bf16.gmra.mxu0 %v1637
        %v1651 = vpop.f32.mrf.mxu0
        %v1652 = vadd.f32 0.0, %v1651
        %v1653 = vpop.f32.mrf.mxu0
        %1654 = vdwg.mxu0
        %v1655 = vrot.slane %v1557, 4
        %v1656 = vsel %vm505, %v1655, %v1519
        %v1657 = vrot.slane %v1519, 4
        %v1658 = vsel %vm505, %v1557, %v1657
        %v1660 = vunpack.c.l.s4 1983009808
        %v1661 = vunpack.c.0.s8 %v1660
        %v1662 = vperm.slane %v1656, %v1661
        %v1664 = vunpack.c.l.s4 1983009808
        %v1665 = vunpack.c.0.s8 %v1664
        %v1666 = vperm.slane %v1658, %v1665
        %v1667 = vrot.slane %v1576, 4
        %v1668 = vsel %vm505, %v1667, %v1538
        %v1669 = vrot.slane %v1538, 4
        %v1670 = vsel %vm505, %v1576, %v1669
        %v1672 = vunpack.c.l.s4 1983009808
        %v1673 = vunpack.c.0.s8 %v1672
        %v1674 = vperm.slane %v1668, %v1673
        %v1676 = vunpack.c.l.s4 1983009808
        %v1677 = vunpack.c.0.s8 %v1676
        %v1678 = vperm.slane %v1670, %v1677
        %v1679 = vrot.slane %v1674, 4
        %v1680 = vsel %vm505, %v1679, %v1662
        %v1681 = vrot.slane %v1662, 4
        %v1682 = vsel %vm505, %v1674, %v1681
        %v1684 = vunpack.c.l.s4 1934713408
        %v1685 = vunpack.c.0.s8 %v1684
        %v1686 = vperm.slane %v1680, %v1685
        %v1688 = vunpack.c.l.s4 1934713408
        %v1689 = vunpack.c.0.s8 %v1688
        %v1690 = vperm.slane %v1682, %v1689
        %v1691 = vrot.slane %v1678, 4
        %v1692 = vsel %vm505, %v1691, %v1666
        %v1693 = vrot.slane %v1666, 4
        %v1694 = vsel %vm505, %v1678, %v1693
        %v1696 = vunpack.c.l.s4 1934713408
        %v1697 = vunpack.c.0.s8 %v1696
        %v1698 = vperm.slane %v1692, %v1697
        %v1700 = vunpack.c.l.s4 1934713408
        %v1701 = vunpack.c.0.s8 %v1700
        %v1702 = vperm.slane %v1694, %v1701
        %v1703 = vrot.slane %v1686, 4
        %v1704 = vsel %vm505, 0.0, %v1703
        %v1705 = vrot.slane %v1690, 4
        %v1706 = vsel %vm505, 0.0, %v1705
        %v1707 = vrot.slane %v1698, 4
        %v1708 = vsel %vm505, 0.0, %v1707
        %v1709 = vrot.slane %v1702, 4
        %v1710 = vsel %vm505, 0.0, %v1709
        %v1711 = vrot.slane %v1633, 4
        %v1712 = vsel %vm505, %v1711, %v1595
        %v1713 = vrot.slane %v1595, 4
        %v1714 = vsel %vm505, %v1633, %v1713
        %v1716 = vunpack.c.l.s4 1983009808
        %v1717 = vunpack.c.0.s8 %v1716
        %v1718 = vperm.slane %v1712, %v1717
        %v1720 = vunpack.c.l.s4 1983009808
        %v1721 = vunpack.c.0.s8 %v1720
        %v1722 = vperm.slane %v1714, %v1721
        %v1723 = vrot.slane %v1652, 4
        %v1724 = vsel %vm505, %v1723, %v1614
        %v1725 = vrot.slane %v1614, 4
        %v1726 = vsel %vm505, %v1652, %v1725
        %v1728 = vunpack.c.l.s4 1983009808
        %v1729 = vunpack.c.0.s8 %v1728
        %v1730 = vperm.slane %v1724, %v1729
        %v1732 = vunpack.c.l.s4 1983009808
        %v1733 = vunpack.c.0.s8 %v1732
        %v1734 = vperm.slane %v1726, %v1733
        %v1735 = vrot.slane %v1730, 4
        %v1736 = vsel %vm505, %v1735, %v1718
        %v1737 = vrot.slane %v1718, 4
        %v1738 = vsel %vm505, %v1730, %v1737
        %v1740 = vunpack.c.l.s4 1934713408
        %v1741 = vunpack.c.0.s8 %v1740
        %v1742 = vperm.slane %v1736, %v1741
        %v1744 = vunpack.c.l.s4 1934713408
        %v1745 = vunpack.c.0.s8 %v1744
        %v1746 = vperm.slane %v1738, %v1745
        %v1747 = vrot.slane %v1734, 4
        %v1748 = vsel %vm505, %v1747, %v1722
        %v1749 = vrot.slane %v1722, 4
        %v1750 = vsel %vm505, %v1734, %v1749
        %v1752 = vunpack.c.l.s4 1934713408
        %v1753 = vunpack.c.0.s8 %v1752
        %v1754 = vperm.slane %v1748, %v1753
        %v1756 = vunpack.c.l.s4 1934713408
        %v1757 = vunpack.c.0.s8 %v1756
        %v1758 = vperm.slane %v1750, %v1757
        %v1759 = vrot.slane %v1742, 4
        %v1760 = vsel %vm505, 0.0, %v1759
        %v1761 = vrot.slane %v1746, 4
        %v1762 = vsel %vm505, 0.0, %v1761
        %v1763 = vrot.slane %v1754, 4
        %v1764 = vsel %vm505, 0.0, %v1763
        %v1765 = vrot.slane %v1758, 4
        %v1766 = vsel %vm505, 0.0, %v1765
        %v1767 = vsel %vm505, %v1705, %v1686
        %v1769 = vunpack.c.l.s4 1983009808
        %v1770 = vunpack.c.0.s8 %v1769
        %v1771 = vperm.slane %v1767, %v1770
        %v1772 = vrot.slane %v1706, 4
        %v1773 = vsel %vm505, %v1772, %v1704
        %v1775 = vunpack.c.l.s4 1983009808
        %v1776 = vunpack.c.0.s8 %v1775
        %v1777 = vperm.slane %v1773, %v1776
        %v1778 = vsel %vm505, %v1709, %v1698
        %v1780 = vunpack.c.l.s4 1983009808
        %v1781 = vunpack.c.0.s8 %v1780
        %v1782 = vperm.slane %v1778, %v1781
        %v1783 = vrot.slane %v1710, 4
        %v1784 = vsel %vm505, %v1783, %v1708
        %v1786 = vunpack.c.l.s4 1983009808
        %v1787 = vunpack.c.0.s8 %v1786
        %v1788 = vperm.slane %v1784, %v1787
        %v1789 = vrot.slane %v1777, 4
        %v1790 = vsel %vm505, %v1789, %v1771
        %v1791 = vrot.slane %v1771, 4
        %v1792 = vsel %vm505, %v1777, %v1791
        %v1794 = vunpack.c.l.s4 1934713408
        %v1795 = vunpack.c.0.s8 %v1794
        %v1796 = vperm.slane %v1790, %v1795
        %v1798 = vunpack.c.l.s4 1934713408
        %v1799 = vunpack.c.0.s8 %v1798
        %v1800 = vperm.slane %v1792, %v1799
        %v1801 = vrot.slane %v1788, 4
        %v1802 = vsel %vm505, %v1801, %v1782
        %v1803 = vrot.slane %v1782, 4
        %v1804 = vsel %vm505, %v1788, %v1803
        %v1806 = vunpack.c.l.s4 1934713408
        %v1807 = vunpack.c.0.s8 %v1806
        %v1808 = vperm.slane %v1802, %v1807
        %v1810 = vunpack.c.l.s4 1934713408
        %v1811 = vunpack.c.0.s8 %v1810
        %v1812 = vperm.slane %v1804, %v1811
        %v1813 = vrot.slane %v1808, 4
        %v1814 = vsel %vm505, %v1813, %v1796
        %v1815 = vrot.slane %v1796, 4
        %v1816 = vsel %vm505, %v1808, %v1815
        %v1817 = vrot.slane %v1812, 4
        %v1818 = vsel %vm505, %v1817, %v1800
        %v1819 = vrot.slane %v1800, 4
        %v1820 = vsel %vm505, %v1812, %v1819
        %v1821 = vsel %vm505, %v1761, %v1742
        %v1823 = vunpack.c.l.s4 1983009808
        %v1824 = vunpack.c.0.s8 %v1823
        %v1825 = vperm.slane %v1821, %v1824
        %v1826 = vrot.slane %v1762, 4
        %v1827 = vsel %vm505, %v1826, %v1760
        %v1829 = vunpack.c.l.s4 1983009808
        %v1830 = vunpack.c.0.s8 %v1829
        %v1831 = vperm.slane %v1827, %v1830
        %v1832 = vsel %vm505, %v1765, %v1754
        %v1834 = vunpack.c.l.s4 1983009808
        %v1835 = vunpack.c.0.s8 %v1834
        %v1836 = vperm.slane %v1832, %v1835
        %v1837 = vrot.slane %v1766, 4
        %v1838 = vsel %vm505, %v1837, %v1764
        %v1840 = vunpack.c.l.s4 1983009808
        %v1841 = vunpack.c.0.s8 %v1840
        %v1842 = vperm.slane %v1838, %v1841
        %v1843 = vrot.slane %v1831, 4
        %v1844 = vsel %vm505, %v1843, %v1825
        %v1845 = vrot.slane %v1825, 4
        %v1846 = vsel %vm505, %v1831, %v1845
        %v1848 = vunpack.c.l.s4 1934713408
        %v1849 = vunpack.c.0.s8 %v1848
        %v1850 = vperm.slane %v1844, %v1849
        %v1852 = vunpack.c.l.s4 1934713408
        %v1853 = vunpack.c.0.s8 %v1852
        %v1854 = vperm.slane %v1846, %v1853
        %v1855 = vrot.slane %v1842, 4
        %v1856 = vsel %vm505, %v1855, %v1836
        %v1857 = vrot.slane %v1836, 4
        %v1858 = vsel %vm505, %v1842, %v1857
        %v1860 = vunpack.c.l.s4 1934713408
        %v1861 = vunpack.c.0.s8 %v1860
        %v1862 = vperm.slane %v1856, %v1861
        %v1864 = vunpack.c.l.s4 1934713408
        %v1865 = vunpack.c.0.s8 %v1864
        %v1866 = vperm.slane %v1858, %v1865
        %v1867 = vrot.slane %v1862, 4
        %v1868 = vsel %vm505, %v1867, %v1850
        %v1869 = vrot.slane %v1850, 4
        %v1870 = vsel %vm505, %v1862, %v1869
        %v1871 = vrot.slane %v1866, 4
        %v1872 = vsel %vm505, %v1871, %v1854
        %v1873 = vrot.slane %v1854, 4
        %v1874 = vsel %vm505, %v1866, %v1873
        %1877 = vrot.lane.b32.xlu0 %v1816, 8
        %v1878 = vpop.permute.xlu0 %1877
        %1879 = vrot.lane.b32.xlu0 %v1870, 8
        %v1880 = vpop.permute.xlu0 %1879
        %1885 = vrot.lane.b32.xlu0 %v1818, 16
        %v1886 = vpop.permute.xlu0 %1885
        %1887 = vrot.lane.b32.xlu0 %v1872, 16
        %v1888 = vpop.permute.xlu0 %1887
        %1893 = vrot.lane.b32.xlu0 %v1820, 24
        %v1894 = vpop.permute.xlu0 %1893
        %1895 = vrot.lane.b32.xlu0 %v1874, 24
        %v1896 = vpop.permute.xlu0 %1895
        %v1899 = vsel %vm1237, %v1814, %v1878
        %v1900 = vsel %vm1237, %v1868, %v1880
        %vm1901 = vcmask 130048
        %v1902 = vsel %vm1901, %v1899, %v1886
        %v1903 = vsel %vm1901, %v1900, %v1888
        %vm1904 = vcmask 195584
        %v1905 = vsel %vm1904, %v1902, %v1894
        %v1906 = vsel %vm1904, %v1903, %v1896
        %v1907 = vpack.c.bf16 %v1906, %v1905
        %v1908 = vld [vmem:[%s418] sm:$0xf]
        %v1909 = vld [vmem:[%s418 + $0x4] sm:$0xf]
        %v1910 = vld [vmem:[%s418 + $0x8] sm:$0xf]
        %v1911 = vld [vmem:[%s418 + $0xc] sm:$0xf]
        %v1912 = vperm.slane %v443, 0
        %v1917 = vunpack.c.l.b16 %v1908
        %v1918 = vunpack.c.l.b16 %v1909
        %v1919 = vunpack.c.l.b16 %v1910
        %v1920 = vunpack.c.l.b16 %v1911
        %v1921 = vpack.c.b16 %v1918, %v1917
        %v1922 = vpack.c.b16 %v1920, %v1919
        %v1926 = vsel %vm466, %v1907, 0
        %1928 = vmatpush.bf16.msra.mxu0 0
        %1929 = vmatpush.bf16.msra.mxu0 0
        %1930 = vmatpush.bf16.msra.mxu0 0
        %1931 = vmatpush.bf16.msra.mxu0 0
        %1932 = vmatpush.bf16.msra.mxu0 0
        %1933 = vmatpush.bf16.msra.mxu0 0
        %1934 = vmatpush.bf16.msra.mxu0 %v1922
        %1935 = vmatpush.bf16.msra.mxu0 %v1921
        %1936 = vmatmul.bf16.gmra.mxu0 %v1926
        %v1937 = vpop.f32.mrf.mxu0
        %v1938 = vadd.f32 %v1912, %v1937
        %v1939 = vpop.f32.mrf.mxu0
        %v1940 = vadd.f32 %v1912, %v1939
        %1941 = vdwg.mxu0
        %v1942 = vadd.f32 %v440, %v1938
        %v1943 = vadd.f32 %v441, %v1940
        %v1944 = vsel %vm466, %v1942, 0.0
        %1945 = vadd.xlane.f32.xlu0 %v1944
        %v1946 = vpop.xlane.xlu0 %1945
        %v1947 = vsel %vm466, %v1943, 0.0
        %1948 = vadd.xlane.f32.xlu0 %v1947
        %v1949 = vpop.xlane.xlu0 %1948
        %v1950 = vrcp.pop 32.0
        %v1951 = vmul.f32 32.0, %v1950
        %v1952 = vsub.f32 1.0, %v1951
        %v1953 = vmul.f32 %v1950, %v1952
        %v1954 = vadd.f32 %v1950, %v1953
        %vm1955 = vweird.f32 %v1950
        %v1956 = vsel %vm1955, %v1950, %v1954
        %v1957 = vmul.f32 %v1946, %v1956
        %v1958 = vmul.f32 %v1949, %v1956
        %v1959 = vsub.f32 %v1942, %v1957
        %v1960 = vsub.f32 %v1943, %v1958
        %v1961 = vmul.f32 %v1959, %v1959
        %v1962 = vmul.f32 %v1960, %v1960
        %v1963 = vsel %vm466, %v1961, 0.0
        %1964 = vadd.xlane.f32.xlu0 %v1963
        %v1965 = vpop.xlane.xlu0 %1964
        %v1966 = vsel %vm466, %v1962, 0.0
        %1967 = vadd.xlane.f32.xlu0 %v1966
        %v1968 = vpop.xlane.xlu0 %1967
        %v1969 = vmul.f32 %v1965, %v1956
        %v1970 = vmul.f32 %v1968, %v1956
        %v1971 = vadd.f32 %v1969, 1e-05
        %v1972 = vadd.f32 %v1970, 1e-05
        %v1973 = vrsqrt.pop %v1971
        %v1974 = vmul.f32 %v1973, %v1971
        %v1975 = vmul.f32 %v1974, %v1973
        %v1976 = vmul.f32 0.5, %v1975
        %v1977 = vsub.f32 1.5, %v1976
        %v1978 = vmul.f32 %v1973, %v1977
        %vm1979 = vweird.f32 %v1971
        %vm1980 = vweird.f32 %v1973
        %vm1981 = vmor %vm1979, %vm1980
        %v1982 = vsel %vm1981, %v1973, %v1978
        %v1983 = vrsqrt.pop %v1972
        %v1984 = vmul.f32 %v1983, %v1972
        %v1985 = vmul.f32 %v1984, %v1983
        %v1986 = vmul.f32 0.5, %v1985
        %v1987 = vsub.f32 1.5, %v1986
        %v1988 = vmul.f32 %v1983, %v1987
        %vm1989 = vweird.f32 %v1972
        %vm1990 = vweird.f32 %v1983
        %vm1991 = vmor %vm1989, %vm1990
        %v1992 = vsel %vm1991, %v1983, %v1988
        %v1993 = vmul.f32 %v1959, %v1982
        %v1994 = vmul.f32 %v1960, %v1992
        %v1995 = vperm.slane %v444, 0
        %v1996 = vmul.f32 %v1993, %v1995
        %v1997 = vmul.f32 %v1994, %v1995
        %v1998 = vperm.slane %v445, 0
        %v1999 = vadd.f32 %v1996, %v1998
        %v2000 = vadd.f32 %v1997, %v1998
        %v2001 = vpack.c.bf16 %v2000, %v1999
        %v2002 = vld [vmem:[%s423] sm:$0xf]
        %v2003 = vld [vmem:[%s423 + $0x4] sm:$0xf]
        %v2004 = vld [vmem:[%s423 + $0x8] sm:$0xf]
        %v2005 = vld [vmem:[%s423 + $0xc] sm:$0xf]
        %v2010 = vunpack.c.l.b16 %v2002
        %v2011 = vunpack.c.l.b16 %v2003
        %v2012 = vunpack.c.l.b16 %v2004
        %v2013 = vunpack.c.l.b16 %v2005
        %v2014 = vpack.c.b16 %v2011, %v2010
        %v2015 = vpack.c.b16 %v2013, %v2012
        %v2019 = vsel %vm466, %v2001, 0
        %2021 = vmatpush.bf16.msra.mxu0 0
        %2022 = vmatpush.bf16.msra.mxu0 0
        %2023 = vmatpush.bf16.msra.mxu0 0
        %2024 = vmatpush.bf16.msra.mxu0 0
        %2025 = vmatpush.bf16.msra.mxu0 0
        %2026 = vmatpush.bf16.msra.mxu0 0
        %2027 = vmatpush.bf16.msra.mxu0 %v2015
        %2028 = vmatpush.bf16.msra.mxu0 %v2014
        %2029 = vmatmul.bf16.gmra.mxu0 %v2019
        %v2030 = vpop.f32.mrf.mxu0
        %v2031 = vadd.f32 0.0, %v2030
        %v2032 = vpop.f32.mrf.mxu0
        %v2033 = vadd.f32 0.0, %v2032
        %2034 = vdwg.mxu0
        %v2035 = vmax.f32 %v2031, 0.0
        %v2036 = vmax.f32 %v2033, 0.0
        %v2037 = vpack.c.bf16 %v2036, %v2035
        %v2038 = vld [vmem:[%s428] sm:$0xf]
        %v2039 = vld [vmem:[%s428 + $0x4] sm:$0xf]
        %v2040 = vld [vmem:[%s428 + $0x8] sm:$0xf]
        %v2041 = vld [vmem:[%s428 + $0xc] sm:$0xf]
        %v2042 = vld [vmem:[%s428 + $0x10] sm:$0xf]
        %v2043 = vld [vmem:[%s428 + $0x14] sm:$0xf]
        %v2044 = vld [vmem:[%s428 + $0x18] sm:$0xf]
        %v2045 = vld [vmem:[%s428 + $0x1c] sm:$0xf]
        %v2054 = vunpack.c.l.b16 %v2038
        %v2055 = vunpack.c.l.b16 %v2039
        %v2056 = vunpack.c.l.b16 %v2040
        %v2057 = vunpack.c.l.b16 %v2041
        %v2058 = vunpack.c.l.b16 %v2042
        %v2059 = vunpack.c.l.b16 %v2043
        %v2060 = vunpack.c.l.b16 %v2044
        %v2061 = vunpack.c.l.b16 %v2045
        %v2062 = vpack.c.b16 %v2055, %v2054
        %v2063 = vpack.c.b16 %v2057, %v2056
        %v2064 = vpack.c.b16 %v2059, %v2058
        %v2065 = vpack.c.b16 %v2061, %v2060
        %vm2070 = vcmask 523264
        %v2072 = vsel %vm2070, %v2037, 0
        %2074 = vmatpush.bf16.msra.mxu0 0
        %2075 = vmatpush.bf16.msra.mxu0 0
        %2076 = vmatpush.bf16.msra.mxu0 0
        %2077 = vmatpush.bf16.msra.mxu0 0
        %2078 = vmatpush.bf16.msra.mxu0 %v2065
        %2079 = vmatpush.bf16.msra.mxu0 %v2064
        %2080 = vmatpush.bf16.msra.mxu0 %v2063
        %2081 = vmatpush.bf16.msra.mxu0 %v2062
        %2082 = vmatmul.bf16.gmra.mxu0 %v2072
        %v2083 = vpop.f32.mrf.mxu0
        %v2084 = vadd.f32 0.0, %v2083
        %v2085 = vpop.f32.mrf.mxu0
        %v2086 = vadd.f32 0.0, %v2085
        %2087 = vdwg.mxu0
        %v2088 = vadd.f32 %v1999, %v2084
        %v2089 = vadd.f32 %v2000, %v2086
        %v2090 = vsel %vm466, %v2088, 0.0
        %2091 = vadd.xlane.f32.xlu0 %v2090
        %v2092 = vpop.xlane.xlu0 %2091
        %v2093 = vsel %vm466, %v2089, 0.0
        %2094 = vadd.xlane.f32.xlu0 %v2093
        %v2095 = vpop.xlane.xlu0 %2094
        %v2096 = vmul.f32 %v2092, %v1956
        %v2097 = vmul.f32 %v2095, %v1956
        %v2098 = vsub.f32 %v2088, %v2096
        %v2099 = vsub.f32 %v2089, %v2097
        %v2100 = vmul.f32 %v2098, %v2098
        %v2101 = vmul.f32 %v2099, %v2099
        %v2102 = vsel %vm466, %v2100, 0.0
        %2103 = vadd.xlane.f32.xlu0 %v2102
        %v2104 = vpop.xlane.xlu0 %2103
        %v2105 = vsel %vm466, %v2101, 0.0
        %2106 = vadd.xlane.f32.xlu0 %v2105
        %v2107 = vpop.xlane.xlu0 %2106
        %v2108 = vmul.f32 %v2104, %v1956
        %v2109 = vmul.f32 %v2107, %v1956
        %v2110 = vadd.f32 %v2108, 1e-05
        %v2111 = vadd.f32 %v2109, 1e-05
        %v2112 = vrsqrt.pop %v2110
        %v2113 = vmul.f32 %v2112, %v2110
        %v2114 = vmul.f32 %v2113, %v2112
        %v2115 = vmul.f32 0.5, %v2114
        %v2116 = vsub.f32 1.5, %v2115
        %v2117 = vmul.f32 %v2112, %v2116
        %vm2118 = vweird.f32 %v2110
        %vm2119 = vweird.f32 %v2112
        %vm2120 = vmor %vm2118, %vm2119
        %v2121 = vsel %vm2120, %v2112, %v2117
        %v2122 = vrsqrt.pop %v2111
        %v2123 = vmul.f32 %v2122, %v2111
        %v2124 = vmul.f32 %v2123, %v2122
        %v2125 = vmul.f32 0.5, %v2124
        %v2126 = vsub.f32 1.5, %v2125
        %v2127 = vmul.f32 %v2122, %v2126
        %vm2128 = vweird.f32 %v2111
        %vm2129 = vweird.f32 %v2122
        %vm2130 = vmor %vm2128, %vm2129
        %v2131 = vsel %vm2130, %v2122, %v2127
        %v2132 = vmul.f32 %v2098, %v2121
        %v2133 = vmul.f32 %v2099, %v2131
        %v2134 = vperm.slane %v446, 0
        %v2135 = vmul.f32 %v2132, %v2134
        %v2136 = vmul.f32 %v2133, %v2134
        %v2137 = vperm.slane %v447, 0
        %v2138 = vadd.f32 %v2135, %v2137
        %v2139 = vadd.f32 %v2136, %v2137
        %2140 = vst.msk [vmem:[#allocation2] sm:$0xff] %vm466, %v2138
        %2141 = vst.msk [vmem:[#allocation2 + $0x8] sm:$0xff] %vm466, %v2139
        %p2142 = scmp.eq.s32.totalorder %s26, 1
        // Predicated region
        $region65: #{tpu_custom_call.1} parent=47 // pred_check
          %p2143 = pneg %p2142
        $region66: #{tpu_custom_call.1} parent=47 // pred_check_branch
          %2145 = sbr.rel (%p2143) target = $region68
        $region67: #{tpu_custom_call.1} parent=47 // pred_region
          %2146 = vst.msk [vmem:[#allocation9] sm:$0xff] %vm466, %v2138
          %2147 = vst.msk [vmem:[#allocation9 + $0x8] sm:$0xff] %vm466, %v2139
        $region68: #{tpu_custom_call.1} parent=47 // pred_fallthru
          _
        // Predicated region
        $region69: #{tpu_custom_call.1} parent=47 // pred_check
          %p2148 = pneg %p233
        $region70: #{tpu_custom_call.1} parent=47 // pred_check_branch
          %2150 = sbr.rel (%p2148) target = $region72
        $region71: #{tpu_custom_call.1} parent=47 // pred_region
          %s2151 = smul.u32 2, %s25
          %2153 = vsyncadd [#allocation5], 0
          %s2154 = smul.addr %s2151, 8
          %s2155 = scalar_lea.hbm %s7, %s2154
          %s2156 = sshll.u32 [#allocation9], 4
          %s2157 = int_to_ptr.vmem [resolvable:$true] %s2156
          %s2158 = sshll.u32 %s2155, 4
          %s2159 = int_to_ptr.hbm [resolvable:$true] %s2158
          %2164 = dma.vmem_to_hbm [thread:$0]  %s2157, 256, %s2159, [#allocation5], 128, 128, 8
        $region72: #{tpu_custom_call.1} parent=47 // pred_fallthru
          _
        // Predicated region
        $region73: #{tpu_custom_call.1} parent=47 // pred_check
          %p2165 = pneg %p233
        $region74: #{tpu_custom_call.1} parent=47 // pred_check_branch
          %2167 = sbr.rel (%p2165) target = $region76
        $region75: #{tpu_custom_call.1} parent=47 // pred_region
          %2169 = dma.done [#allocation5], 256
        $region76: #{tpu_custom_call.1} parent=47 // pred_fallthru
          _
      $region48: #{tpu_custom_call.1} parent=5 // pred_fallthru
        _
      %p2170 = scmp.le.s32.totalorder 2, %s16
      // Predicated region
      $region77: #{tpu_custom_call.1} parent=5 // pred_check
        %p2171 = pneg %p2170
      $region78: #{tpu_custom_call.1} parent=5 // pred_check_branch
        %2173 = sbr.rel (%p2171) target = $region80
      $region79: #{tpu_custom_call.1} parent=5 // pred_region
        %s2174 = ssub.s32 %s16, 2
      $region80: #{tpu_custom_call.1} parent=5 // pred_fallthru
        _
    $region6: #{tpu_custom_call.1} parent=1 // loop_footer
      %s20 = sadd.s32 1, %s16
    $region7: #{tpu_custom_call.1} parent=1 // loop_footer_branch
      %15 = sbr.rel target = $region3
    $region8: #{tpu_custom_call.1} parent=1 // loop_exit
      _
    %2175 = vsyncpa [#allocation4], 1
    %s2176 = scalar_lea.sflag [#allocation4], 1
    %2177 = vsyncpa %s2176, 1
    %2178 = vsyncpa [#allocation7], 1
    %2179 = vsyncpa [#allocation5], 1
    %s2180 = scalar_lea.sflag [#allocation5], 1
    %2181 = vsyncpa %s2180, 1

</llo_original>
